<compile_context>
chip_gen: v7x
topology: tpu7x:2x2x1
jax: 0.10.0
libtpu: 0.0.40
codegen_flags: <defaults>
</compile_context>

<pallas_src>
import jax
import jax.numpy as jnp
from jax import lax
from jax.experimental import pallas as pl
from jax.experimental.pallas import tpu as pltpu

LANE = 128


def _nlp_kernel(tok_ref, emb_ref, w_ref, b_ref, out_ref):
    """tok_ref: VMEM (BB, S) int32 token ids for this batch block.
    emb_ref:  VMEM (V_pad, D_pad) f32 zero-padded embedding table.
    w_ref:    VMEM (S*D_pad, C_pad) f32 pre-transposed, zero-padded FC weight.
    b_ref:    VMEM (1, C_pad) f32 zero-padded bias.
    out_ref:  VMEM (BB, C_pad) f32 lane-dense output block."""
    tok = tok_ref[...]                       # (BB, S) int32
    BB, S = tok.shape
    V_pad = emb_ref.shape[0]

    emb = emb_ref[...]                       # (V_pad, D_pad)
    vocab_ids = lax.broadcasted_iota(jnp.int32, (BB, V_pad), 1)

    # One-hot MXU gather per sequence position (S == 2, fully static unroll).
    gathered = []
    for s in range(S):
        onehot = (tok[:, s:s + 1] == vocab_ids).astype(jnp.float32)   # (BB, V_pad)
        gathered.append(
            jnp.dot(onehot, emb, preferred_element_type=jnp.float32,
                    precision=lax.Precision.HIGHEST))                 # (BB, D_pad)

    # Lane-concatenate the per-position embeddings -> flattened (BB, S*D_pad);
    # D_pad is a multiple of 128 so this is pure vreg placement (no relayout).
    flat = jnp.concatenate(gathered, axis=-1)

    # Single lane-aligned FC matmul, bias folded in via broadcast add.
    out = jnp.dot(flat, w_ref[...], preferred_element_type=jnp.float32,
                  precision=lax.Precision.HIGHEST) + b_ref[...]
    out_ref[...] = out.astype(out_ref.dtype)


def simple_nlp_forward(tokens, emb_table, fc_weight, fc_bias):
    """tokens: (B, S=2) int; emb_table: (V, D) f32;
    fc_weight: (C, S*D) f32 (PyTorch nn.Linear layout); fc_bias: (C,) f32."""
    B, S = tokens.shape
    V, D = emb_table.shape
    C = fc_bias.shape[0]
    assert fc_weight.shape == (C, S * D)

    V_pad = pl.cdiv(V, LANE) * LANE
    D_pad = pl.cdiv(D, LANE) * LANE
    C_pad = pl.cdiv(C, LANE) * LANE

    # Batch block: whole batch (rounded to the 8-row f32 sublane) when small,
    # 128-row blocks otherwise so v7x's second TensorCore gets parallel work.
    BB = min(pl.cdiv(B, 8) * 8, 128)
    B_pad = pl.cdiv(B, BB) * BB

    # One-time layout glue outside the hot path (padding / transpose only, no
    # compute hoisted out of the kernel).
    tok_p = jnp.pad(tokens.astype(jnp.int32), ((0, B_pad - B), (0, 0)))
    emb_p = jnp.pad(emb_table, ((0, V_pad - V), (0, D_pad - D)))
    w = jnp.transpose(fc_weight, (1, 0)).reshape(S, D, C)
    w = jnp.pad(w, ((0, 0), (0, D_pad - D), (0, C_pad - C)))
    w = w.reshape(S * D_pad, C_pad)
    b = jnp.pad(fc_bias, (0, C_pad - C)).reshape(1, C_pad)

    out_padded = pl.pallas_call(
        _nlp_kernel,
        out_shape=jax.ShapeDtypeStruct((B_pad, C_pad), jnp.float32),
        grid=(B_pad // BB,),
        in_specs=[
            pl.BlockSpec((BB, S), lambda i: (i, 0)),               # tokens
            pl.BlockSpec((V_pad, D_pad), lambda i: (0, 0)),        # emb table
            pl.BlockSpec((S * D_pad, C_pad), lambda i: (0, 0)),    # FC weight
            pl.BlockSpec((1, C_pad), lambda i: (0, 0)),            # FC bias
        ],
        out_specs=pl.BlockSpec((BB, C_pad), lambda i: (i, 0)),
        compiler_params=pltpu.CompilerParams(
            dimension_semantics=("parallel",),
        ),
    )(tok_p, emb_p, w, b)

    return out_padded[:B, :C]


if __name__ == "__main__":
    # Small deterministic setup consistent with the module:
    # vocab_size = 50, embed_dim = 10, num_classes = 2, batch = 8, seq = 2.
    vocab_size = 50
    embed_dim = 10
    num_classes = 2
    batch = 8
    seq = 2

    key = jax.random.PRNGKey(0)
    k_emb, k_w, k_b, k_tok = jax.random.split(key, 4)

    emb_table = jax.random.normal(k_emb, (vocab_size, embed_dim), dtype=jnp.float32)
    fc_weight = jax.random.normal(k_w, (num_classes, embed_dim * seq),
                                  dtype=jnp.float32) * 0.1
    fc_bias = jax.random.normal(k_b, (num_classes,), dtype=jnp.float32) * 0.1
    tokens = jax.random.randint(k_tok, (batch, seq), 0, vocab_size, dtype=jnp.int32)

    out = jax.jit(simple_nlp_forward)(tokens, emb_table, fc_weight, fc_bias)
    out = jax.block_until_ready(out)

    # Pure-JAX reference (exact gather + high-precision matmul), same semantics
    # as the torch forward: embedding -> flatten -> linear.
    flat = emb_table[tokens].reshape(batch, -1)
    ref = jnp.matmul(flat, fc_weight.T, precision=lax.Precision.HIGHEST) + fc_bias

    assert out.shape == (batch, num_classes)
    assert jnp.allclose(out, ref, atol=1e-5, rtol=1e-5)

    print("KERNEL_OK")
</pallas_src>

<mosaic_0001>
module attributes {stable_mosaic.version = 11 : i64} {
  func.func @_nlp_kernel(%arg0: i32, %arg1: memref<8x2xi32, #tpu.memory_space<vmem>>, %arg2: memref<128x128xf32, #tpu.memory_space<vmem>>, %arg3: memref<256x128xf32, #tpu.memory_space<vmem>>, %arg4: memref<1x128xf32, #tpu.memory_space<vmem>>, %arg5: memref<8x128xf32, #tpu.memory_space<vmem>>) attributes {dimension_semantics = [#tpu.dimension_semantics<parallel>], iteration_bounds = array<i64: 1>, scalar_prefetch = 0 : i64, scratch_operands = 0 : i64, tpu.core_type = #tpu.core_type<tc>, window_params = [{transform_indices = @transform_0, window_bounds = array<i64: 8, 2>}, {pipeline_mode = #tpu.pipeline_mode<synchronous>, transform_indices = @transform_1, window_bounds = array<i64: 128, 128>}, {pipeline_mode = #tpu.pipeline_mode<synchronous>, transform_indices = @transform_2, window_bounds = array<i64: 256, 128>}, {pipeline_mode = #tpu.pipeline_mode<synchronous>, transform_indices = @transform_3, window_bounds = array<i64: 1, 128>}, {transform_indices = @transform_4, window_bounds = array<i64: 8, 128>}]} {
    %c0 = arith.constant 0 : index
    %c0_0 = arith.constant 0 : index
    %0 = vector.load %arg1[%c0, %c0_0] : memref<8x2xi32, #tpu.memory_space<vmem>>, vector<8x2xi32>
    %c0_1 = arith.constant 0 : index
    %c0_2 = arith.constant 0 : index
    %1 = vector.load %arg2[%c0_1, %c0_2] : memref<128x128xf32, #tpu.memory_space<vmem>>, vector<128x128xf32>
    %2 = tpu.iota {dimensions = array<i32: 1>} : vector<8x128xi32>
    %3 = vector.extract_strided_slice %0 {offsets = [0, 0], sizes = [8, 1], strides = [1, 1]} : vector<8x2xi32> to vector<8x1xi32>
    %4 = vector.broadcast %3 : vector<8x1xi32> to vector<8x128xi32>
    %5 = arith.cmpi eq, %4, %2 : vector<8x128xi32>
    %6 = arith.extui %5 : vector<8x128xi1> to vector<8x128xi32>
    %7 = arith.sitofp %6 : vector<8x128xi32> to vector<8x128xf32>
    %cst = arith.constant dense<0.000000e+00> : vector<8x128xf32>
    %8 = tpu.matmul %7, %1, %cst {dimension_numbers = #tpu.dot_dimension_numbers<[1], [0], [0], [1], [0, 0, 1, 1], [], []>, precision = #tpu.contract_precision<fp32>} : vector<8x128xf32>, vector<128x128xf32>, vector<8x128xf32> -> vector<8x128xf32>
    %9 = vector.extract_strided_slice %0 {offsets = [0, 1], sizes = [8, 1], strides = [1, 1]} : vector<8x2xi32> to vector<8x1xi32>
    %10 = vector.broadcast %9 : vector<8x1xi32> to vector<8x128xi32>
    %11 = arith.cmpi eq, %10, %2 : vector<8x128xi32>
    %12 = arith.extui %11 : vector<8x128xi1> to vector<8x128xi32>
    %13 = arith.sitofp %12 : vector<8x128xi32> to vector<8x128xf32>
    %cst_3 = arith.constant dense<0.000000e+00> : vector<8x128xf32>
    %14 = tpu.matmul %13, %1, %cst_3 {dimension_numbers = #tpu.dot_dimension_numbers<[1], [0], [0], [1], [0, 0, 1, 1], [], []>, precision = #tpu.contract_precision<fp32>} : vector<8x128xf32>, vector<128x128xf32>, vector<8x128xf32> -> vector<8x128xf32>
    %15 = tpu.concatenate %8, %14 in 1 : vector<8x128xf32>, vector<8x128xf32> -> vector<8x256xf32>
    %c0_4 = arith.constant 0 : index
    %c0_5 = arith.constant 0 : index
    %16 = vector.load %arg3[%c0_4, %c0_5] : memref<256x128xf32, #tpu.memory_space<vmem>>, vector<256x128xf32>
    %cst_6 = arith.constant dense<0.000000e+00> : vector<8x128xf32>
    %17 = tpu.matmul %15, %16, %cst_6 {dimension_numbers = #tpu.dot_dimension_numbers<[1], [0], [0], [1], [0, 0, 1, 1], [], []>, precision = #tpu.contract_precision<fp32>} : vector<8x256xf32>, vector<256x128xf32>, vector<8x128xf32> -> vector<8x128xf32>
    %c0_7 = arith.constant 0 : index
    %c0_8 = arith.constant 0 : index
    %18 = vector.load %arg4[%c0_7, %c0_8] : memref<1x128xf32, #tpu.memory_space<vmem>>, vector<1x128xf32>
    %19 = vector.broadcast %18 : vector<1x128xf32> to vector<8x128xf32>
    %20 = arith.addf %17, %19 : vector<8x128xf32>
    %c0_9 = arith.constant 0 : index
    %c0_10 = arith.constant 0 : index
    %21 = vector.load %arg5[%c0_9, %c0_10] : memref<8x128xf32, #tpu.memory_space<vmem>>, vector<8x128xf32>
    tpu.vector_store %arg5[%c0_9, %c0_10], %20 {strides = array<i32>} : memref<8x128xf32, #tpu.memory_space<vmem>>, vector<8x128xf32>,
    return
  }
  func.func @transform_0(%arg0: i32) -> (i32, i32) {
    %c0_i32 = arith.constant 0 : i32
    %c0_i32_0 = arith.constant 0 : i32
    return %arg0, %c0_i32 : i32, i32
  }
  func.func @transform_1(%arg0: i32) -> (i32, i32) {
    %c0_i32 = arith.constant 0 : i32
    %c0_i32_0 = arith.constant 0 : i32
    %c0_i32_1 = arith.constant 0 : i32
    return %c0_i32, %c0_i32_0 : i32, i32
  }
  func.func @transform_2(%arg0: i32) -> (i32, i32) {
    %c0_i32 = arith.constant 0 : i32
    %c0_i32_0 = arith.constant 0 : i32
    %c0_i32_1 = arith.constant 0 : i32
    return %c0_i32, %c0_i32_0 : i32, i32
  }
  func.func @transform_3(%arg0: i32) -> (i32, i32) {
    %c0_i32 = arith.constant 0 : i32
    %c0_i32_0 = arith.constant 0 : i32
    %c0_i32_1 = arith.constant 0 : i32
    return %c0_i32, %c0_i32_0 : i32, i32
  }
  func.func @transform_4(%arg0: i32) -> (i32, i32) {
    %c0_i32 = arith.constant 0 : i32
    %c0_i32_0 = arith.constant 0 : i32
    return %arg0, %c0_i32 : i32, i32
  }
}

</mosaic_0001>

<llo_original>
// kernel: simple_nlp_forward.1
$region0: #{simple_nlp_forward.1}
  #allocation0 [shape = 'u32[]', space=smem, size = 0x4, offset = 0x4, fixed_abs, tag = 'smem constant byte address 0x4 - core index']
  #allocation1 [shape = 'u32[144,128]{1,0:T(1,128)}', space=vmem, size = 0x12000, scoped, tag = 'internal scratch']
  %s0 = inlined_call_operand.vmem [shape: s32[8,2], index: 0, kind: input, shape index: {}]
  %s1 = inlined_call_operand.vmem [shape: f32[128,128], index: 1, kind: input, shape index: {}]
  %s2 = inlined_call_operand.vmem [shape: f32[256,128], index: 2, kind: input, shape index: {}]
  %s3 = inlined_call_operand.vmem [shape: f32[1,128], index: 3, kind: input, shape index: {}]
  %s4 = inlined_call_operand.vmem [shape: f32[8,128], index: 4, kind: output, shape index: {}]
  %s5 = sld [smem:[#allocation0]]
  $region26: #{simple_nlp_forward.1} parent=0
    _
  %s7 = ssub.s32 1, %s5
  %s8 = scalar_select 0, %s7, %s5
  // Predicated region
  $region2: #{simple_nlp_forward.1} parent=0 // pred_check
    _
  $region3: #{simple_nlp_forward.1} parent=0 // pred_check_branch
    %10 = sbr.rel (0) target = $region5
  $region4: #{simple_nlp_forward.1} parent=0 // pred_region
    _
  $region5: #{simple_nlp_forward.1} parent=0 // pred_fallthru
    _
  // Predicated region
  $region6: #{simple_nlp_forward.1} parent=0 // pred_check
    _
  $region7: #{simple_nlp_forward.1} parent=0 // pred_check_branch
    %12 = sbr.rel (0) target = $region9
  $region8: #{simple_nlp_forward.1} parent=0 // pred_region
    _
  $region9: #{simple_nlp_forward.1} parent=0 // pred_fallthru
    _
  // Predicated region
  $region10: #{simple_nlp_forward.1} parent=0 // pred_check
    _
  $region11: #{simple_nlp_forward.1} parent=0 // pred_check_branch
    %14 = sbr.rel (0) target = $region13
  $region12: #{simple_nlp_forward.1} parent=0 // pred_region
    _
  $region13: #{simple_nlp_forward.1} parent=0 // pred_fallthru
    _
  // Predicated region
  $region14: #{simple_nlp_forward.1} parent=0 // pred_check
    _
  $region15: #{simple_nlp_forward.1} parent=0 // pred_check_branch
    %16 = sbr.rel (0) target = $region17
  $region16: #{simple_nlp_forward.1} parent=0 // pred_region
    _
  $region17: #{simple_nlp_forward.1} parent=0 // pred_fallthru
    _
  %v17 = vld [vmem:[%s0] sm:$0xff]
  %v18 = vld [vmem:[%s1] sm:$0xff]
  %v19 = vld [vmem:[%s1 + $0x8] sm:$0xff]
  %v20 = vld [vmem:[%s1 + $0x10] sm:$0xff]
  %v21 = vld [vmem:[%s1 + $0x18] sm:$0xff]
  %v22 = vld [vmem:[%s1 + $0x20] sm:$0xff]
  %v23 = vld [vmem:[%s1 + $0x28] sm:$0xff]
  %v24 = vld [vmem:[%s1 + $0x30] sm:$0xff]
  %v25 = vld [vmem:[%s1 + $0x38] sm:$0xff]
  %v26 = vld [vmem:[%s1 + $0x40] sm:$0xff]
  %v27 = vld [vmem:[%s1 + $0x48] sm:$0xff]
  %v28 = vld [vmem:[%s1 + $0x50] sm:$0xff]
  %v29 = vld [vmem:[%s1 + $0x58] sm:$0xff]
  %v30 = vld [vmem:[%s1 + $0x60] sm:$0xff]
  %v31 = vld [vmem:[%s1 + $0x68] sm:$0xff]
  %v32 = vld [vmem:[%s1 + $0x70] sm:$0xff]
  %v33 = vld [vmem:[%s1 + $0x78] sm:$0xff]
  %v34 = vlaneseq
  %v35 = vand.u32 %v34, 127
  %36 = vset.pattern.permute.xlu0 0
  %37 = vperm.xlu0 %36, %v17
  %v38 = vpop.permute.xlu0 %37
  %vm39 = vcmp.eq.s32.totalorder %v38, %v35
  %v40 = vsel %vm39, 1, 0
  %v41 = vcvt.s32.f32 %v40
  %42 = vmatprep.subr.mxu0 0.0
  %v43 = vand.u32 %v18, 4294901760
  %44 = vmatpush1.msra.mxu0 %v43
  %45 = vmatprep.subr.mxu0 0.0
  %v46 = vand.u32 %v19, 4294901760
  %47 = vmatpush1.msra.mxu0 %v46
  %48 = vmatprep.subr.mxu0 0.0
  %v49 = vand.u32 %v20, 4294901760
  %50 = vmatpush1.msra.mxu0 %v49
  %51 = vmatprep.subr.mxu0 0.0
  %v52 = vand.u32 %v21, 4294901760
  %53 = vmatpush1.msra.mxu0 %v52
  %54 = vmatprep.subr.mxu0 0.0
  %v55 = vand.u32 %v22, 4294901760
  %56 = vmatpush1.msra.mxu0 %v55
  %57 = vmatprep.subr.mxu0 0.0
  %v58 = vand.u32 %v23, 4294901760
  %59 = vmatpush1.msra.mxu0 %v58
  %60 = vmatprep.subr.mxu0 0.0
  %v61 = vand.u32 %v24, 4294901760
  %62 = vmatpush1.msra.mxu0 %v61
  %63 = vmatprep.subr.mxu0 0.0
  %v64 = vand.u32 %v25, 4294901760
  %65 = vmatpush1.msra.mxu0 %v64
  %66 = vmatprep.subr.mxu0 0.0
  %v67 = vand.u32 %v26, 4294901760
  %68 = vmatpush1.msra.mxu0 %v67
  %69 = vmatprep.subr.mxu0 0.0
  %v70 = vand.u32 %v27, 4294901760
  %71 = vmatpush1.msra.mxu0 %v70
  %72 = vmatprep.subr.mxu0 0.0
  %v73 = vand.u32 %v28, 4294901760
  %74 = vmatpush1.msra.mxu0 %v73
  %75 = vmatprep.subr.mxu0 0.0
  %v76 = vand.u32 %v29, 4294901760
  %77 = vmatpush1.msra.mxu0 %v76
  %78 = vmatprep.subr.mxu0 0.0
  %v79 = vand.u32 %v30, 4294901760
  %80 = vmatpush1.msra.mxu0 %v79
  %81 = vmatprep.subr.mxu0 0.0
  %v82 = vand.u32 %v31, 4294901760
  %83 = vmatpush1.msra.mxu0 %v82
  %84 = vmatprep.subr.mxu0 0.0
  %v85 = vand.u32 %v32, 4294901760
  %86 = vmatpush1.msra.mxu0 %v85
  %87 = vmatprep.subr.mxu0 0.0
  %v88 = vand.u32 %v33, 4294901760
  %89 = vmatpush1.msra.mxu0 %v88
  %90 = vmatprep.subr.mxu0 0.0
  %91 = vmatpush1.msra.mxu0 0.0
  %92 = vmatprep.subr.mxu0 0.0
  %93 = vmatpush1.msra.mxu0 0.0
  %94 = vmatprep.subr.mxu0 0.0
  %95 = vmatpush1.msra.mxu0 0.0
  %96 = vmatprep.subr.mxu0 0.0
  %97 = vmatpush1.msra.mxu0 0.0
  %98 = vmatprep.subr.mxu0 0.0
  %99 = vmatpush1.msra.mxu0 0.0
  %100 = vmatprep.subr.mxu0 0.0
  %101 = vmatpush1.msra.mxu0 0.0
  %102 = vmatprep.subr.mxu0 0.0
  %103 = vmatpush1.msra.mxu0 0.0
  %104 = vmatprep.subr.mxu0 0.0
  %105 = vmatpush1.msra.mxu0 0.0
  %106 = vmatprep.subr.mxu0 0.0
  %107 = vmatpush1.msra.mxu0 0.0
  %108 = vmatprep.subr.mxu0 0.0
  %109 = vmatpush1.msra.mxu0 0.0
  %110 = vmatprep.subr.mxu0 0.0
  %111 = vmatpush1.msra.mxu0 0.0
  %112 = vmatprep.subr.mxu0 0.0
  %113 = vmatpush1.msra.mxu0 0.0
  %114 = vmatprep.subr.mxu0 0.0
  %115 = vmatpush1.msra.mxu0 0.0
  %116 = vmatprep.subr.mxu0 0.0
  %117 = vmatpush1.msra.mxu0 0.0
  %118 = vmatprep.subr.mxu0 0.0
  %119 = vmatpush1.msra.mxu0 0.0
  %120 = vmatprep.subr.mxu0 0.0
  %121 = vmatpush1.msra.mxu0 0.0
  %122 = vmatprep.mubr.f32.mxu0 0.0
  %v123 = vand.u32 %v41, 4294901760
  %v124 = vsub.f32 %v41, %v123
  %v125 = vand.u32 %v124, 4294901760
  %v126 = vsub.f32 %v124, %v125
  %v127 = vand.u32 %v126, 4294901760
  %128 = vmatmul.mubr.f32.gmra.mrb[0].mxu0 %v127
  %v129 = vpop.f32.mrb[0].mxu0
  %v130 = vadd.f32 0.0, %v129
  %v131 = vpop.f32.mrb[0].mxu0
  %132 = vdwg.mxu0
  %133 = vmatprep.subr.mxu0 0.0
  %v134 = vand.u32 %v18, 4294901760
  %v135 = vsub.f32 %v18, %v134
  %v136 = vand.u32 %v135, 4294901760
  %v137 = vsub.f32 %v135, %v136
  %v138 = vand.u32 %v137, 4294901760
  %139 = vmatpush1.msra.mxu0 %v138
  %140 = vmatprep.subr.mxu0 0.0
  %v141 = vand.u32 %v19, 4294901760
  %v142 = vsub.f32 %v19, %v141
  %v143 = vand.u32 %v142, 4294901760
  %v144 = vsub.f32 %v142, %v143
  %v145 = vand.u32 %v144, 4294901760
  %146 = vmatpush1.msra.mxu0 %v145
  %147 = vmatprep.subr.mxu0 0.0
  %v148 = vand.u32 %v20, 4294901760
  %v149 = vsub.f32 %v20, %v148
  %v150 = vand.u32 %v149, 4294901760
  %v151 = vsub.f32 %v149, %v150
  %v152 = vand.u32 %v151, 4294901760
  %153 = vmatpush1.msra.mxu0 %v152
  %154 = vmatprep.subr.mxu0 0.0
  %v155 = vand.u32 %v21, 4294901760
  %v156 = vsub.f32 %v21, %v155
  %v157 = vand.u32 %v156, 4294901760
  %v158 = vsub.f32 %v156, %v157
  %v159 = vand.u32 %v158, 4294901760
  %160 = vmatpush1.msra.mxu0 %v159
  %161 = vmatprep.subr.mxu0 0.0
  %v162 = vand.u32 %v22, 4294901760
  %v163 = vsub.f32 %v22, %v162
  %v164 = vand.u32 %v163, 4294901760
  %v165 = vsub.f32 %v163, %v164
  %v166 = vand.u32 %v165, 4294901760
  %167 = vmatpush1.msra.mxu0 %v166
  %168 = vmatprep.subr.mxu0 0.0
  %v169 = vand.u32 %v23, 4294901760
  %v170 = vsub.f32 %v23, %v169
  %v171 = vand.u32 %v170, 4294901760
  %v172 = vsub.f32 %v170, %v171
  %v173 = vand.u32 %v172, 4294901760
  %174 = vmatpush1.msra.mxu0 %v173
  %175 = vmatprep.subr.mxu0 0.0
  %v176 = vand.u32 %v24, 4294901760
  %v177 = vsub.f32 %v24, %v176
  %v178 = vand.u32 %v177, 4294901760
  %v179 = vsub.f32 %v177, %v178
  %v180 = vand.u32 %v179, 4294901760
  %181 = vmatpush1.msra.mxu0 %v180
  %182 = vmatprep.subr.mxu0 0.0
  %v183 = vand.u32 %v25, 4294901760
  %v184 = vsub.f32 %v25, %v183
  %v185 = vand.u32 %v184, 4294901760
  %v186 = vsub.f32 %v184, %v185
  %v187 = vand.u32 %v186, 4294901760
  %188 = vmatpush1.msra.mxu0 %v187
  %189 = vmatprep.subr.mxu0 0.0
  %v190 = vand.u32 %v26, 4294901760
  %v191 = vsub.f32 %v26, %v190
  %v192 = vand.u32 %v191, 4294901760
  %v193 = vsub.f32 %v191, %v192
  %v194 = vand.u32 %v193, 4294901760
  %195 = vmatpush1.msra.mxu0 %v194
  %196 = vmatprep.subr.mxu0 0.0
  %v197 = vand.u32 %v27, 4294901760
  %v198 = vsub.f32 %v27, %v197
  %v199 = vand.u32 %v198, 4294901760
  %v200 = vsub.f32 %v198, %v199
  %v201 = vand.u32 %v200, 4294901760
  %202 = vmatpush1.msra.mxu0 %v201
  %203 = vmatprep.subr.mxu0 0.0
  %v204 = vand.u32 %v28, 4294901760
  %v205 = vsub.f32 %v28, %v204
  %v206 = vand.u32 %v205, 4294901760
  %v207 = vsub.f32 %v205, %v206
  %v208 = vand.u32 %v207, 4294901760
  %209 = vmatpush1.msra.mxu0 %v208
  %210 = vmatprep.subr.mxu0 0.0
  %v211 = vand.u32 %v29, 4294901760
  %v212 = vsub.f32 %v29, %v211
  %v213 = vand.u32 %v212, 4294901760
  %v214 = vsub.f32 %v212, %v213
  %v215 = vand.u32 %v214, 4294901760
  %216 = vmatpush1.msra.mxu0 %v215
  %217 = vmatprep.subr.mxu0 0.0
  %v218 = vand.u32 %v30, 4294901760
  %v219 = vsub.f32 %v30, %v218
  %v220 = vand.u32 %v219, 4294901760
  %v221 = vsub.f32 %v219, %v220
  %v222 = vand.u32 %v221, 4294901760
  %223 = vmatpush1.msra.mxu0 %v222
  %224 = vmatprep.subr.mxu0 0.0
  %v225 = vand.u32 %v31, 4294901760
  %v226 = vsub.f32 %v31, %v225
  %v227 = vand.u32 %v226, 4294901760
  %v228 = vsub.f32 %v226, %v227
  %v229 = vand.u32 %v228, 4294901760
  %230 = vmatpush1.msra.mxu0 %v229
  %231 = vmatprep.subr.mxu0 0.0
  %v232 = vand.u32 %v32, 4294901760
  %v233 = vsub.f32 %v32, %v232
  %v234 = vand.u32 %v233, 4294901760
  %v235 = vsub.f32 %v233, %v234
  %v236 = vand.u32 %v235, 4294901760
  %237 = vmatpush1.msra.mxu0 %v236
  %238 = vmatprep.subr.mxu0 0.0
  %v239 = vand.u32 %v33, 4294901760
  %v240 = vsub.f32 %v33, %v239
  %v241 = vand.u32 %v240, 4294901760
  %v242 = vsub.f32 %v240, %v241
  %v243 = vand.u32 %v242, 4294901760
  %244 = vmatpush1.msra.mxu0 %v243
  %245 = vmatprep.subr.mxu0 0.0
  %246 = vmatpush1.msra.mxu0 0.0
  %247 = vmatprep.subr.mxu0 0.0
  %248 = vmatpush1.msra.mxu0 0.0
  %249 = vmatprep.subr.mxu0 0.0
  %250 = vmatpush1.msra.mxu0 0.0
  %251 = vmatprep.subr.mxu0 0.0
  %252 = vmatpush1.msra.mxu0 0.0
  %253 = vmatprep.subr.mxu0 0.0
  %254 = vmatpush1.msra.mxu0 0.0
  %255 = vmatprep.subr.mxu0 0.0
  %256 = vmatpush1.msra.mxu0 0.0
  %257 = vmatprep.subr.mxu0 0.0
  %258 = vmatpush1.msra.mxu0 0.0
  %259 = vmatprep.subr.mxu0 0.0
  %260 = vmatpush1.msra.mxu0 0.0
  %261 = vmatprep.subr.mxu0 0.0
  %262 = vmatpush1.msra.mxu0 0.0
  %263 = vmatprep.subr.mxu0 0.0
  %264 = vmatpush1.msra.mxu0 0.0
  %265 = vmatprep.subr.mxu0 0.0
  %266 = vmatpush1.msra.mxu0 0.0
  %267 = vmatprep.subr.mxu0 0.0
  %268 = vmatpush1.msra.mxu0 0.0
  %269 = vmatprep.subr.mxu0 0.0
  %270 = vmatpush1.msra.mxu0 0.0
  %271 = vmatprep.subr.mxu0 0.0
  %272 = vmatpush1.msra.mxu0 0.0
  %273 = vmatprep.subr.mxu0 0.0
  %274 = vmatpush1.msra.mxu0 0.0
  %275 = vmatprep.subr.mxu0 0.0
  %276 = vmatpush1.msra.mxu0 0.0
  %277 = vmatprep.mubr.f32.mxu0 0.0
  %v278 = vand.u32 %v41, 4294901760
  %279 = vmatmul.mubr.f32.gmra.mrb[0].mxu0 %v278
  %v280 = vpop.f32.mrb[0].mxu0
  %v281 = vadd.f32 %v130, %v280
  %v282 = vpop.f32.mrb[0].mxu0
  %283 = vdwg.mxu0
  %284 = vmatprep.subr.mxu0 0.0
  %v285 = vand.u32 %v18, 4294901760
  %v286 = vsub.f32 %v18, %v285
  %287 = vmatpush1.msra.mxu0 %v286
  %288 = vmatprep.subr.mxu0 0.0
  %v289 = vand.u32 %v19, 4294901760
  %v290 = vsub.f32 %v19, %v289
  %291 = vmatpush1.msra.mxu0 %v290
  %292 = vmatprep.subr.mxu0 0.0
  %v293 = vand.u32 %v20, 4294901760
  %v294 = vsub.f32 %v20, %v293
  %295 = vmatpush1.msra.mxu0 %v294
  %296 = vmatprep.subr.mxu0 0.0
  %v297 = vand.u32 %v21, 4294901760
  %v298 = vsub.f32 %v21, %v297
  %299 = vmatpush1.msra.mxu0 %v298
  %300 = vmatprep.subr.mxu0 0.0
  %v301 = vand.u32 %v22, 4294901760
  %v302 = vsub.f32 %v22, %v301
  %303 = vmatpush1.msra.mxu0 %v302
  %304 = vmatprep.subr.mxu0 0.0
  %v305 = vand.u32 %v23, 4294901760
  %v306 = vsub.f32 %v23, %v305
  %307 = vmatpush1.msra.mxu0 %v306
  %308 = vmatprep.subr.mxu0 0.0
  %v309 = vand.u32 %v24, 4294901760
  %v310 = vsub.f32 %v24, %v309
  %311 = vmatpush1.msra.mxu0 %v310
  %312 = vmatprep.subr.mxu0 0.0
  %v313 = vand.u32 %v25, 4294901760
  %v314 = vsub.f32 %v25, %v313
  %315 = vmatpush1.msra.mxu0 %v314
  %316 = vmatprep.subr.mxu0 0.0
  %v317 = vand.u32 %v26, 4294901760
  %v318 = vsub.f32 %v26, %v317
  %319 = vmatpush1.msra.mxu0 %v318
  %320 = vmatprep.subr.mxu0 0.0
  %v321 = vand.u32 %v27, 4294901760
  %v322 = vsub.f32 %v27, %v321
  %323 = vmatpush1.msra.mxu0 %v322
  %324 = vmatprep.subr.mxu0 0.0
  %v325 = vand.u32 %v28, 4294901760
  %v326 = vsub.f32 %v28, %v325
  %327 = vmatpush1.msra.mxu0 %v326
  %328 = vmatprep.subr.mxu0 0.0
  %v329 = vand.u32 %v29, 4294901760
  %v330 = vsub.f32 %v29, %v329
  %331 = vmatpush1.msra.mxu0 %v330
  %332 = vmatprep.subr.mxu0 0.0
  %v333 = vand.u32 %v30, 4294901760
  %v334 = vsub.f32 %v30, %v333
  %335 = vmatpush1.msra.mxu0 %v334
  %336 = vmatprep.subr.mxu0 0.0
  %v337 = vand.u32 %v31, 4294901760
  %v338 = vsub.f32 %v31, %v337
  %339 = vmatpush1.msra.mxu0 %v338
  %340 = vmatprep.subr.mxu0 0.0
  %v341 = vand.u32 %v32, 4294901760
  %v342 = vsub.f32 %v32, %v341
  %343 = vmatpush1.msra.mxu0 %v342
  %344 = vmatprep.subr.mxu0 0.0
  %v345 = vand.u32 %v33, 4294901760
  %v346 = vsub.f32 %v33, %v345
  %347 = vmatpush1.msra.mxu0 %v346
  %348 = vmatprep.subr.mxu0 0.0
  %349 = vmatpush1.msra.mxu0 0.0
  %350 = vmatprep.subr.mxu0 0.0
  %351 = vmatpush1.msra.mxu0 0.0
  %352 = vmatprep.subr.mxu0 0.0
  %353 = vmatpush1.msra.mxu0 0.0
  %354 = vmatprep.subr.mxu0 0.0
  %355 = vmatpush1.msra.mxu0 0.0
  %356 = vmatprep.subr.mxu0 0.0
  %357 = vmatpush1.msra.mxu0 0.0
  %358 = vmatprep.subr.mxu0 0.0
  %359 = vmatpush1.msra.mxu0 0.0
  %360 = vmatprep.subr.mxu0 0.0
  %361 = vmatpush1.msra.mxu0 0.0
  %362 = vmatprep.subr.mxu0 0.0
  %363 = vmatpush1.msra.mxu0 0.0
  %364 = vmatprep.subr.mxu0 0.0
  %365 = vmatpush1.msra.mxu0 0.0
  %366 = vmatprep.subr.mxu0 0.0
  %367 = vmatpush1.msra.mxu0 0.0
  %368 = vmatprep.subr.mxu0 0.0
  %369 = vmatpush1.msra.mxu0 0.0
  %370 = vmatprep.subr.mxu0 0.0
  %371 = vmatpush1.msra.mxu0 0.0
  %372 = vmatprep.subr.mxu0 0.0
  %373 = vmatpush1.msra.mxu0 0.0
  %374 = vmatprep.subr.mxu0 0.0
  %375 = vmatpush1.msra.mxu0 0.0
  %376 = vmatprep.subr.mxu0 0.0
  %377 = vmatpush1.msra.mxu0 0.0
  %378 = vmatprep.subr.mxu0 0.0
  %379 = vmatpush1.msra.mxu0 0.0
  %380 = vmatprep.mubr.f32.mxu0 0.0
  %v381 = vand.u32 %v41, 4294901760
  %v382 = vsub.f32 %v41, %v381
  %383 = vmatmul.mubr.f32.gmra.mrb[0].mxu0 %v382
  %v384 = vpop.f32.mrb[0].mxu0
  %v385 = vadd.f32 %v281, %v384
  %v386 = vpop.f32.mrb[0].mxu0
  %387 = vdwg.mxu0
  %388 = vmatprep.subr.mxu0 0.0
  %v389 = vand.u32 %v18, 4294901760
  %390 = vmatpush1.msra.mxu0 %v389
  %391 = vmatprep.subr.mxu0 0.0
  %v392 = vand.u32 %v19, 4294901760
  %393 = vmatpush1.msra.mxu0 %v392
  %394 = vmatprep.subr.mxu0 0.0
  %v395 = vand.u32 %v20, 4294901760
  %396 = vmatpush1.msra.mxu0 %v395
  %397 = vmatprep.subr.mxu0 0.0
  %v398 = vand.u32 %v21, 4294901760
  %399 = vmatpush1.msra.mxu0 %v398
  %400 = vmatprep.subr.mxu0 0.0
  %v401 = vand.u32 %v22, 4294901760
  %402 = vmatpush1.msra.mxu0 %v401
  %403 = vmatprep.subr.mxu0 0.0
  %v404 = vand.u32 %v23, 4294901760
  %405 = vmatpush1.msra.mxu0 %v404
  %406 = vmatprep.subr.mxu0 0.0
  %v407 = vand.u32 %v24, 4294901760
  %408 = vmatpush1.msra.mxu0 %v407
  %409 = vmatprep.subr.mxu0 0.0
  %v410 = vand.u32 %v25, 4294901760
  %411 = vmatpush1.msra.mxu0 %v410
  %412 = vmatprep.subr.mxu0 0.0
  %v413 = vand.u32 %v26, 4294901760
  %414 = vmatpush1.msra.mxu0 %v413
  %415 = vmatprep.subr.mxu0 0.0
  %v416 = vand.u32 %v27, 4294901760
  %417 = vmatpush1.msra.mxu0 %v416
  %418 = vmatprep.subr.mxu0 0.0
  %v419 = vand.u32 %v28, 4294901760
  %420 = vmatpush1.msra.mxu0 %v419
  %421 = vmatprep.subr.mxu0 0.0
  %v422 = vand.u32 %v29, 4294901760
  %423 = vmatpush1.msra.mxu0 %v422
  %424 = vmatprep.subr.mxu0 0.0
  %v425 = vand.u32 %v30, 4294901760
  %426 = vmatpush1.msra.mxu0 %v425
  %427 = vmatprep.subr.mxu0 0.0
  %v428 = vand.u32 %v31, 4294901760
  %429 = vmatpush1.msra.mxu0 %v428
  %430 = vmatprep.subr.mxu0 0.0
  %v431 = vand.u32 %v32, 4294901760
  %432 = vmatpush1.msra.mxu0 %v431
  %433 = vmatprep.subr.mxu0 0.0
  %v434 = vand.u32 %v33, 4294901760
  %435 = vmatpush1.msra.mxu0 %v434
  %436 = vmatprep.subr.mxu0 0.0
  %437 = vmatpush1.msra.mxu0 0.0
  %438 = vmatprep.subr.mxu0 0.0
  %439 = vmatpush1.msra.mxu0 0.0
  %440 = vmatprep.subr.mxu0 0.0
  %441 = vmatpush1.msra.mxu0 0.0
  %442 = vmatprep.subr.mxu0 0.0
  %443 = vmatpush1.msra.mxu0 0.0
  %444 = vmatprep.subr.mxu0 0.0
  %445 = vmatpush1.msra.mxu0 0.0
  %446 = vmatprep.subr.mxu0 0.0
  %447 = vmatpush1.msra.mxu0 0.0
  %448 = vmatprep.subr.mxu0 0.0
  %449 = vmatpush1.msra.mxu0 0.0
  %450 = vmatprep.subr.mxu0 0.0
  %451 = vmatpush1.msra.mxu0 0.0
  %452 = vmatprep.subr.mxu0 0.0
  %453 = vmatpush1.msra.mxu0 0.0
  %454 = vmatprep.subr.mxu0 0.0
  %455 = vmatpush1.msra.mxu0 0.0
  %456 = vmatprep.subr.mxu0 0.0
  %457 = vmatpush1.msra.mxu0 0.0
  %458 = vmatprep.subr.mxu0 0.0
  %459 = vmatpush1.msra.mxu0 0.0
  %460 = vmatprep.subr.mxu0 0.0
  %461 = vmatpush1.msra.mxu0 0.0
  %462 = vmatprep.subr.mxu0 0.0
  %463 = vmatpush1.msra.mxu0 0.0
  %464 = vmatprep.subr.mxu0 0.0
  %465 = vmatpush1.msra.mxu0 0.0
  %466 = vmatprep.subr.mxu0 0.0
  %467 = vmatpush1.msra.mxu0 0.0
  %468 = vmatprep.mubr.f32.mxu0 0.0
  %v469 = vand.u32 %v41, 4294901760
  %v470 = vsub.f32 %v41, %v469
  %v471 = vand.u32 %v470, 4294901760
  %472 = vmatmul.mubr.f32.gmra.mrb[0].mxu0 %v471
  %v473 = vpop.f32.mrb[0].mxu0
  %v474 = vadd.f32 %v385, %v473
  %v475 = vpop.f32.mrb[0].mxu0
  %476 = vdwg.mxu0
  %477 = vmatprep.subr.mxu0 0.0
  %v478 = vand.u32 %v18, 4294901760
  %v479 = vsub.f32 %v18, %v478
  %v480 = vand.u32 %v479, 4294901760
  %481 = vmatpush1.msra.mxu0 %v480
  %482 = vmatprep.subr.mxu0 0.0
  %v483 = vand.u32 %v19, 4294901760
  %v484 = vsub.f32 %v19, %v483
  %v485 = vand.u32 %v484, 4294901760
  %486 = vmatpush1.msra.mxu0 %v485
  %487 = vmatprep.subr.mxu0 0.0
  %v488 = vand.u32 %v20, 4294901760
  %v489 = vsub.f32 %v20, %v488
  %v490 = vand.u32 %v489, 4294901760
  %491 = vmatpush1.msra.mxu0 %v490
  %492 = vmatprep.subr.mxu0 0.0
  %v493 = vand.u32 %v21, 4294901760
  %v494 = vsub.f32 %v21, %v493
  %v495 = vand.u32 %v494, 4294901760
  %496 = vmatpush1.msra.mxu0 %v495
  %497 = vmatprep.subr.mxu0 0.0
  %v498 = vand.u32 %v22, 4294901760
  %v499 = vsub.f32 %v22, %v498
  %v500 = vand.u32 %v499, 4294901760
  %501 = vmatpush1.msra.mxu0 %v500
  %502 = vmatprep.subr.mxu0 0.0
  %v503 = vand.u32 %v23, 4294901760
  %v504 = vsub.f32 %v23, %v503
  %v505 = vand.u32 %v504, 4294901760
  %506 = vmatpush1.msra.mxu0 %v505
  %507 = vmatprep.subr.mxu0 0.0
  %v508 = vand.u32 %v24, 4294901760
  %v509 = vsub.f32 %v24, %v508
  %v510 = vand.u32 %v509, 4294901760
  %511 = vmatpush1.msra.mxu0 %v510
  %512 = vmatprep.subr.mxu0 0.0
  %v513 = vand.u32 %v25, 4294901760
  %v514 = vsub.f32 %v25, %v513
  %v515 = vand.u32 %v514, 4294901760
  %516 = vmatpush1.msra.mxu0 %v515
  %517 = vmatprep.subr.mxu0 0.0
  %v518 = vand.u32 %v26, 4294901760
  %v519 = vsub.f32 %v26, %v518
  %v520 = vand.u32 %v519, 4294901760
  %521 = vmatpush1.msra.mxu0 %v520
  %522 = vmatprep.subr.mxu0 0.0
  %v523 = vand.u32 %v27, 4294901760
  %v524 = vsub.f32 %v27, %v523
  %v525 = vand.u32 %v524, 4294901760
  %526 = vmatpush1.msra.mxu0 %v525
  %527 = vmatprep.subr.mxu0 0.0
  %v528 = vand.u32 %v28, 4294901760
  %v529 = vsub.f32 %v28, %v528
  %v530 = vand.u32 %v529, 4294901760
  %531 = vmatpush1.msra.mxu0 %v530
  %532 = vmatprep.subr.mxu0 0.0
  %v533 = vand.u32 %v29, 4294901760
  %v534 = vsub.f32 %v29, %v533
  %v535 = vand.u32 %v534, 4294901760
  %536 = vmatpush1.msra.mxu0 %v535
  %537 = vmatprep.subr.mxu0 0.0
  %v538 = vand.u32 %v30, 4294901760
  %v539 = vsub.f32 %v30, %v538
  %v540 = vand.u32 %v539, 4294901760
  %541 = vmatpush1.msra.mxu0 %v540
  %542 = vmatprep.subr.mxu0 0.0
  %v543 = vand.u32 %v31, 4294901760
  %v544 = vsub.f32 %v31, %v543
  %v545 = vand.u32 %v544, 4294901760
  %546 = vmatpush1.msra.mxu0 %v545
  %547 = vmatprep.subr.mxu0 0.0
  %v548 = vand.u32 %v32, 4294901760
  %v549 = vsub.f32 %v32, %v548
  %v550 = vand.u32 %v549, 4294901760
  %551 = vmatpush1.msra.mxu0 %v550
  %552 = vmatprep.subr.mxu0 0.0
  %v553 = vand.u32 %v33, 4294901760
  %v554 = vsub.f32 %v33, %v553
  %v555 = vand.u32 %v554, 4294901760
  %556 = vmatpush1.msra.mxu0 %v555
  %557 = vmatprep.subr.mxu0 0.0
  %558 = vmatpush1.msra.mxu0 0.0
  %559 = vmatprep.subr.mxu0 0.0
  %560 = vmatpush1.msra.mxu0 0.0
  %561 = vmatprep.subr.mxu0 0.0
  %562 = vmatpush1.msra.mxu0 0.0
  %563 = vmatprep.subr.mxu0 0.0
  %564 = vmatpush1.msra.mxu0 0.0
  %565 = vmatprep.subr.mxu0 0.0
  %566 = vmatpush1.msra.mxu0 0.0
  %567 = vmatprep.subr.mxu0 0.0
  %568 = vmatpush1.msra.mxu0 0.0
  %569 = vmatprep.subr.mxu0 0.0
  %570 = vmatpush1.msra.mxu0 0.0
  %571 = vmatprep.subr.mxu0 0.0
  %572 = vmatpush1.msra.mxu0 0.0
  %573 = vmatprep.subr.mxu0 0.0
  %574 = vmatpush1.msra.mxu0 0.0
  %575 = vmatprep.subr.mxu0 0.0
  %576 = vmatpush1.msra.mxu0 0.0
  %577 = vmatprep.subr.mxu0 0.0
  %578 = vmatpush1.msra.mxu0 0.0
  %579 = vmatprep.subr.mxu0 0.0
  %580 = vmatpush1.msra.mxu0 0.0
  %581 = vmatprep.subr.mxu0 0.0
  %582 = vmatpush1.msra.mxu0 0.0
  %583 = vmatprep.subr.mxu0 0.0
  %584 = vmatpush1.msra.mxu0 0.0
  %585 = vmatprep.subr.mxu0 0.0
  %586 = vmatpush1.msra.mxu0 0.0
  %587 = vmatprep.subr.mxu0 0.0
  %588 = vmatpush1.msra.mxu0 0.0
  %589 = vmatprep.mubr.f32.mxu0 0.0
  %v590 = vand.u32 %v41, 4294901760
  %591 = vmatmul.mubr.f32.gmra.mrb[0].mxu0 %v590
  %v592 = vpop.f32.mrb[0].mxu0
  %v593 = vadd.f32 %v474, %v592
  %v594 = vpop.f32.mrb[0].mxu0
  %595 = vdwg.mxu0
  %596 = vmatprep.subr.mxu0 0.0
  %v597 = vand.u32 %v18, 4294901760
  %598 = vmatpush1.msra.mxu0 %v597
  %599 = vmatprep.subr.mxu0 0.0
  %v600 = vand.u32 %v19, 4294901760
  %601 = vmatpush1.msra.mxu0 %v600
  %602 = vmatprep.subr.mxu0 0.0
  %v603 = vand.u32 %v20, 4294901760
  %604 = vmatpush1.msra.mxu0 %v603
  %605 = vmatprep.subr.mxu0 0.0
  %v606 = vand.u32 %v21, 4294901760
  %607 = vmatpush1.msra.mxu0 %v606
  %608 = vmatprep.subr.mxu0 0.0
  %v609 = vand.u32 %v22, 4294901760
  %610 = vmatpush1.msra.mxu0 %v609
  %611 = vmatprep.subr.mxu0 0.0
  %v612 = vand.u32 %v23, 4294901760
  %613 = vmatpush1.msra.mxu0 %v612
  %614 = vmatprep.subr.mxu0 0.0
  %v615 = vand.u32 %v24, 4294901760
  %616 = vmatpush1.msra.mxu0 %v615
  %617 = vmatprep.subr.mxu0 0.0
  %v618 = vand.u32 %v25, 4294901760
  %619 = vmatpush1.msra.mxu0 %v618
  %620 = vmatprep.subr.mxu0 0.0
  %v621 = vand.u32 %v26, 4294901760
  %622 = vmatpush1.msra.mxu0 %v621
  %623 = vmatprep.subr.mxu0 0.0
  %v624 = vand.u32 %v27, 4294901760
  %625 = vmatpush1.msra.mxu0 %v624
  %626 = vmatprep.subr.mxu0 0.0
  %v627 = vand.u32 %v28, 4294901760
  %628 = vmatpush1.msra.mxu0 %v627
  %629 = vmatprep.subr.mxu0 0.0
  %v630 = vand.u32 %v29, 4294901760
  %631 = vmatpush1.msra.mxu0 %v630
  %632 = vmatprep.subr.mxu0 0.0
  %v633 = vand.u32 %v30, 4294901760
  %634 = vmatpush1.msra.mxu0 %v633
  %635 = vmatprep.subr.mxu0 0.0
  %v636 = vand.u32 %v31, 4294901760
  %637 = vmatpush1.msra.mxu0 %v636
  %638 = vmatprep.subr.mxu0 0.0
  %v639 = vand.u32 %v32, 4294901760
  %640 = vmatpush1.msra.mxu0 %v639
  %641 = vmatprep.subr.mxu0 0.0
  %v642 = vand.u32 %v33, 4294901760
  %643 = vmatpush1.msra.mxu0 %v642
  %644 = vmatprep.subr.mxu0 0.0
  %645 = vmatpush1.msra.mxu0 0.0
  %646 = vmatprep.subr.mxu0 0.0
  %647 = vmatpush1.msra.mxu0 0.0
  %648 = vmatprep.subr.mxu0 0.0
  %649 = vmatpush1.msra.mxu0 0.0
  %650 = vmatprep.subr.mxu0 0.0
  %651 = vmatpush1.msra.mxu0 0.0
  %652 = vmatprep.subr.mxu0 0.0
  %653 = vmatpush1.msra.mxu0 0.0
  %654 = vmatprep.subr.mxu0 0.0
  %655 = vmatpush1.msra.mxu0 0.0
  %656 = vmatprep.subr.mxu0 0.0
  %657 = vmatpush1.msra.mxu0 0.0
  %658 = vmatprep.subr.mxu0 0.0
  %659 = vmatpush1.msra.mxu0 0.0
  %660 = vmatprep.subr.mxu0 0.0
  %661 = vmatpush1.msra.mxu0 0.0
  %662 = vmatprep.subr.mxu0 0.0
  %663 = vmatpush1.msra.mxu0 0.0
  %664 = vmatprep.subr.mxu0 0.0
  %665 = vmatpush1.msra.mxu0 0.0
  %666 = vmatprep.subr.mxu0 0.0
  %667 = vmatpush1.msra.mxu0 0.0
  %668 = vmatprep.subr.mxu0 0.0
  %669 = vmatpush1.msra.mxu0 0.0
  %670 = vmatprep.subr.mxu0 0.0
  %671 = vmatpush1.msra.mxu0 0.0
  %672 = vmatprep.subr.mxu0 0.0
  %673 = vmatpush1.msra.mxu0 0.0
  %674 = vmatprep.subr.mxu0 0.0
  %675 = vmatpush1.msra.mxu0 0.0
  %676 = vmatprep.mubr.f32.mxu0 0.0
  %v677 = vand.u32 %v41, 4294901760
  %678 = vmatmul.mubr.f32.gmra.mrb[0].mxu0 %v677
  %v679 = vpop.f32.mrb[0].mxu0
  %v680 = vadd.f32 %v593, %v679
  %v681 = vpop.f32.mrb[0].mxu0
  %682 = vdwg.mxu0
  %683 = vset.pattern.permute.xlu0 1
  %684 = vperm.xlu0 %683, %v17
  %v685 = vpop.permute.xlu0 %684
  %vm686 = vcmp.eq.s32.totalorder %v685, %v35
  %v687 = vsel %vm686, 1, 0
  %v688 = vcvt.s32.f32 %v687
  %689 = vmatprep.subr.mxu0 0.0
  %v690 = vand.u32 %v18, 4294901760
  %691 = vmatpush1.msra.mxu0 %v690
  %692 = vmatprep.subr.mxu0 0.0
  %v693 = vand.u32 %v19, 4294901760
  %694 = vmatpush1.msra.mxu0 %v693
  %695 = vmatprep.subr.mxu0 0.0
  %v696 = vand.u32 %v20, 4294901760
  %697 = vmatpush1.msra.mxu0 %v696
  %698 = vmatprep.subr.mxu0 0.0
  %v699 = vand.u32 %v21, 4294901760
  %700 = vmatpush1.msra.mxu0 %v699
  %701 = vmatprep.subr.mxu0 0.0
  %v702 = vand.u32 %v22, 4294901760
  %703 = vmatpush1.msra.mxu0 %v702
  %704 = vmatprep.subr.mxu0 0.0
  %v705 = vand.u32 %v23, 4294901760
  %706 = vmatpush1.msra.mxu0 %v705
  %707 = vmatprep.subr.mxu0 0.0
  %v708 = vand.u32 %v24, 4294901760
  %709 = vmatpush1.msra.mxu0 %v708
  %710 = vmatprep.subr.mxu0 0.0
  %v711 = vand.u32 %v25, 4294901760
  %712 = vmatpush1.msra.mxu0 %v711
  %713 = vmatprep.subr.mxu0 0.0
  %v714 = vand.u32 %v26, 4294901760
  %715 = vmatpush1.msra.mxu0 %v714
  %716 = vmatprep.subr.mxu0 0.0
  %v717 = vand.u32 %v27, 4294901760
  %718 = vmatpush1.msra.mxu0 %v717
  %719 = vmatprep.subr.mxu0 0.0
  %v720 = vand.u32 %v28, 4294901760
  %721 = vmatpush1.msra.mxu0 %v720
  %722 = vmatprep.subr.mxu0 0.0
  %v723 = vand.u32 %v29, 4294901760
  %724 = vmatpush1.msra.mxu0 %v723
  %725 = vmatprep.subr.mxu0 0.0
  %v726 = vand.u32 %v30, 4294901760
  %727 = vmatpush1.msra.mxu0 %v726
  %728 = vmatprep.subr.mxu0 0.0
  %v729 = vand.u32 %v31, 4294901760
  %730 = vmatpush1.msra.mxu0 %v729
  %731 = vmatprep.subr.mxu0 0.0
  %v732 = vand.u32 %v32, 4294901760
  %733 = vmatpush1.msra.mxu0 %v732
  %734 = vmatprep.subr.mxu0 0.0
  %v735 = vand.u32 %v33, 4294901760
  %736 = vmatpush1.msra.mxu0 %v735
  %737 = vmatprep.subr.mxu0 0.0
  %738 = vmatpush1.msra.mxu0 0.0
  %739 = vmatprep.subr.mxu0 0.0
  %740 = vmatpush1.msra.mxu0 0.0
  %741 = vmatprep.subr.mxu0 0.0
  %742 = vmatpush1.msra.mxu0 0.0
  %743 = vmatprep.subr.mxu0 0.0
  %744 = vmatpush1.msra.mxu0 0.0
  %745 = vmatprep.subr.mxu0 0.0
  %746 = vmatpush1.msra.mxu0 0.0
  %747 = vmatprep.subr.mxu0 0.0
  %748 = vmatpush1.msra.mxu0 0.0
  %749 = vmatprep.subr.mxu0 0.0
  %750 = vmatpush1.msra.mxu0 0.0
  %751 = vmatprep.subr.mxu0 0.0
  %752 = vmatpush1.msra.mxu0 0.0
  %753 = vmatprep.subr.mxu0 0.0
  %754 = vmatpush1.msra.mxu0 0.0
  %755 = vmatprep.subr.mxu0 0.0
  %756 = vmatpush1.msra.mxu0 0.0
  %757 = vmatprep.subr.mxu0 0.0
  %758 = vmatpush1.msra.mxu0 0.0
  %759 = vmatprep.subr.mxu0 0.0
  %760 = vmatpush1.msra.mxu0 0.0
  %761 = vmatprep.subr.mxu0 0.0
  %762 = vmatpush1.msra.mxu0 0.0
  %763 = vmatprep.subr.mxu0 0.0
  %764 = vmatpush1.msra.mxu0 0.0
  %765 = vmatprep.subr.mxu0 0.0
  %766 = vmatpush1.msra.mxu0 0.0
  %767 = vmatprep.subr.mxu0 0.0
  %768 = vmatpush1.msra.mxu0 0.0
  %769 = vmatprep.mubr.f32.mxu0 0.0
  %v770 = vand.u32 %v688, 4294901760
  %v771 = vsub.f32 %v688, %v770
  %v772 = vand.u32 %v771, 4294901760
  %v773 = vsub.f32 %v771, %v772
  %v774 = vand.u32 %v773, 4294901760
  %775 = vmatmul.mubr.f32.gmra.mrb[0].mxu0 %v774
  %v776 = vpop.f32.mrb[0].mxu0
  %v777 = vadd.f32 0.0, %v776
  %v778 = vpop.f32.mrb[0].mxu0
  %779 = vdwg.mxu0
  %780 = vmatprep.subr.mxu0 0.0
  %v781 = vand.u32 %v18, 4294901760
  %v782 = vsub.f32 %v18, %v781
  %v783 = vand.u32 %v782, 4294901760
  %v784 = vsub.f32 %v782, %v783
  %v785 = vand.u32 %v784, 4294901760
  %786 = vmatpush1.msra.mxu0 %v785
  %787 = vmatprep.subr.mxu0 0.0
  %v788 = vand.u32 %v19, 4294901760
  %v789 = vsub.f32 %v19, %v788
  %v790 = vand.u32 %v789, 4294901760
  %v791 = vsub.f32 %v789, %v790
  %v792 = vand.u32 %v791, 4294901760
  %793 = vmatpush1.msra.mxu0 %v792
  %794 = vmatprep.subr.mxu0 0.0
  %v795 = vand.u32 %v20, 4294901760
  %v796 = vsub.f32 %v20, %v795
  %v797 = vand.u32 %v796, 4294901760
  %v798 = vsub.f32 %v796, %v797
  %v799 = vand.u32 %v798, 4294901760
  %800 = vmatpush1.msra.mxu0 %v799
  %801 = vmatprep.subr.mxu0 0.0
  %v802 = vand.u32 %v21, 4294901760
  %v803 = vsub.f32 %v21, %v802
  %v804 = vand.u32 %v803, 4294901760
  %v805 = vsub.f32 %v803, %v804
  %v806 = vand.u32 %v805, 4294901760
  %807 = vmatpush1.msra.mxu0 %v806
  %808 = vmatprep.subr.mxu0 0.0
  %v809 = vand.u32 %v22, 4294901760
  %v810 = vsub.f32 %v22, %v809
  %v811 = vand.u32 %v810, 4294901760
  %v812 = vsub.f32 %v810, %v811
  %v813 = vand.u32 %v812, 4294901760
  %814 = vmatpush1.msra.mxu0 %v813
  %815 = vmatprep.subr.mxu0 0.0
  %v816 = vand.u32 %v23, 4294901760
  %v817 = vsub.f32 %v23, %v816
  %v818 = vand.u32 %v817, 4294901760
  %v819 = vsub.f32 %v817, %v818
  %v820 = vand.u32 %v819, 4294901760
  %821 = vmatpush1.msra.mxu0 %v820
  %822 = vmatprep.subr.mxu0 0.0
  %v823 = vand.u32 %v24, 4294901760
  %v824 = vsub.f32 %v24, %v823
  %v825 = vand.u32 %v824, 4294901760
  %v826 = vsub.f32 %v824, %v825
  %v827 = vand.u32 %v826, 4294901760
  %828 = vmatpush1.msra.mxu0 %v827
  %829 = vmatprep.subr.mxu0 0.0
  %v830 = vand.u32 %v25, 4294901760
  %v831 = vsub.f32 %v25, %v830
  %v832 = vand.u32 %v831, 4294901760
  %v833 = vsub.f32 %v831, %v832
  %v834 = vand.u32 %v833, 4294901760
  %835 = vmatpush1.msra.mxu0 %v834
  %836 = vmatprep.subr.mxu0 0.0
  %v837 = vand.u32 %v26, 4294901760
  %v838 = vsub.f32 %v26, %v837
  %v839 = vand.u32 %v838, 4294901760
  %v840 = vsub.f32 %v838, %v839
  %v841 = vand.u32 %v840, 4294901760
  %842 = vmatpush1.msra.mxu0 %v841
  %843 = vmatprep.subr.mxu0 0.0
  %v844 = vand.u32 %v27, 4294901760
  %v845 = vsub.f32 %v27, %v844
  %v846 = vand.u32 %v845, 4294901760
  %v847 = vsub.f32 %v845, %v846
  %v848 = vand.u32 %v847, 4294901760
  %849 = vmatpush1.msra.mxu0 %v848
  %850 = vmatprep.subr.mxu0 0.0
  %v851 = vand.u32 %v28, 4294901760
  %v852 = vsub.f32 %v28, %v851
  %v853 = vand.u32 %v852, 4294901760
  %v854 = vsub.f32 %v852, %v853
  %v855 = vand.u32 %v854, 4294901760
  %856 = vmatpush1.msra.mxu0 %v855
  %857 = vmatprep.subr.mxu0 0.0
  %v858 = vand.u32 %v29, 4294901760
  %v859 = vsub.f32 %v29, %v858
  %v860 = vand.u32 %v859, 4294901760
  %v861 = vsub.f32 %v859, %v860
  %v862 = vand.u32 %v861, 4294901760
  %863 = vmatpush1.msra.mxu0 %v862
  %864 = vmatprep.subr.mxu0 0.0
  %v865 = vand.u32 %v30, 4294901760
  %v866 = vsub.f32 %v30, %v865
  %v867 = vand.u32 %v866, 4294901760
  %v868 = vsub.f32 %v866, %v867
  %v869 = vand.u32 %v868, 4294901760
  %870 = vmatpush1.msra.mxu0 %v869
  %871 = vmatprep.subr.mxu0 0.0
  %v872 = vand.u32 %v31, 4294901760
  %v873 = vsub.f32 %v31, %v872
  %v874 = vand.u32 %v873, 4294901760
  %v875 = vsub.f32 %v873, %v874
  %v876 = vand.u32 %v875, 4294901760
  %877 = vmatpush1.msra.mxu0 %v876
  %878 = vmatprep.subr.mxu0 0.0
  %v879 = vand.u32 %v32, 4294901760
  %v880 = vsub.f32 %v32, %v879
  %v881 = vand.u32 %v880, 4294901760
  %v882 = vsub.f32 %v880, %v881
  %v883 = vand.u32 %v882, 4294901760
  %884 = vmatpush1.msra.mxu0 %v883
  %885 = vmatprep.subr.mxu0 0.0
  %v886 = vand.u32 %v33, 4294901760
  %v887 = vsub.f32 %v33, %v886
  %v888 = vand.u32 %v887, 4294901760
  %v889 = vsub.f32 %v887, %v888
  %v890 = vand.u32 %v889, 4294901760
  %891 = vmatpush1.msra.mxu0 %v890
  %892 = vmatprep.subr.mxu0 0.0
  %893 = vmatpush1.msra.mxu0 0.0
  %894 = vmatprep.subr.mxu0 0.0
  %895 = vmatpush1.msra.mxu0 0.0
  %896 = vmatprep.subr.mxu0 0.0
  %897 = vmatpush1.msra.mxu0 0.0
  %898 = vmatprep.subr.mxu0 0.0
  %899 = vmatpush1.msra.mxu0 0.0
  %900 = vmatprep.subr.mxu0 0.0
  %901 = vmatpush1.msra.mxu0 0.0
  %902 = vmatprep.subr.mxu0 0.0
  %903 = vmatpush1.msra.mxu0 0.0
  %904 = vmatprep.subr.mxu0 0.0
  %905 = vmatpush1.msra.mxu0 0.0
  %906 = vmatprep.subr.mxu0 0.0
  %907 = vmatpush1.msra.mxu0 0.0
  %908 = vmatprep.subr.mxu0 0.0
  %909 = vmatpush1.msra.mxu0 0.0
  %910 = vmatprep.subr.mxu0 0.0
  %911 = vmatpush1.msra.mxu0 0.0
  %912 = vmatprep.subr.mxu0 0.0
  %913 = vmatpush1.msra.mxu0 0.0
  %914 = vmatprep.subr.mxu0 0.0
  %915 = vmatpush1.msra.mxu0 0.0
  %916 = vmatprep.subr.mxu0 0.0
  %917 = vmatpush1.msra.mxu0 0.0
  %918 = vmatprep.subr.mxu0 0.0
  %919 = vmatpush1.msra.mxu0 0.0
  %920 = vmatprep.subr.mxu0 0.0
  %921 = vmatpush1.msra.mxu0 0.0
  %922 = vmatprep.subr.mxu0 0.0
  %923 = vmatpush1.msra.mxu0 0.0
  %924 = vmatprep.mubr.f32.mxu0 0.0
  %v925 = vand.u32 %v688, 4294901760
  %926 = vmatmul.mubr.f32.gmra.mrb[0].mxu0 %v925
  %v927 = vpop.f32.mrb[0].mxu0
  %v928 = vadd.f32 %v777, %v927
  %v929 = vpop.f32.mrb[0].mxu0
  %930 = vdwg.mxu0
  %931 = vmatprep.subr.mxu0 0.0
  %v932 = vand.u32 %v18, 4294901760
  %v933 = vsub.f32 %v18, %v932
  %934 = vmatpush1.msra.mxu0 %v933
  %935 = vmatprep.subr.mxu0 0.0
  %v936 = vand.u32 %v19, 4294901760
  %v937 = vsub.f32 %v19, %v936
  %938 = vmatpush1.msra.mxu0 %v937
  %939 = vmatprep.subr.mxu0 0.0
  %v940 = vand.u32 %v20, 4294901760
  %v941 = vsub.f32 %v20, %v940
  %942 = vmatpush1.msra.mxu0 %v941
  %943 = vmatprep.subr.mxu0 0.0
  %v944 = vand.u32 %v21, 4294901760
  %v945 = vsub.f32 %v21, %v944
  %946 = vmatpush1.msra.mxu0 %v945
  %947 = vmatprep.subr.mxu0 0.0
  %v948 = vand.u32 %v22, 4294901760
  %v949 = vsub.f32 %v22, %v948
  %950 = vmatpush1.msra.mxu0 %v949
  %951 = vmatprep.subr.mxu0 0.0
  %v952 = vand.u32 %v23, 4294901760
  %v953 = vsub.f32 %v23, %v952
  %954 = vmatpush1.msra.mxu0 %v953
  %955 = vmatprep.subr.mxu0 0.0
  %v956 = vand.u32 %v24, 4294901760
  %v957 = vsub.f32 %v24, %v956
  %958 = vmatpush1.msra.mxu0 %v957
  %959 = vmatprep.subr.mxu0 0.0
  %v960 = vand.u32 %v25, 4294901760
  %v961 = vsub.f32 %v25, %v960
  %962 = vmatpush1.msra.mxu0 %v961
  %963 = vmatprep.subr.mxu0 0.0
  %v964 = vand.u32 %v26, 4294901760
  %v965 = vsub.f32 %v26, %v964
  %966 = vmatpush1.msra.mxu0 %v965
  %967 = vmatprep.subr.mxu0 0.0
  %v968 = vand.u32 %v27, 4294901760
  %v969 = vsub.f32 %v27, %v968
  %970 = vmatpush1.msra.mxu0 %v969
  %971 = vmatprep.subr.mxu0 0.0
  %v972 = vand.u32 %v28, 4294901760
  %v973 = vsub.f32 %v28, %v972
  %974 = vmatpush1.msra.mxu0 %v973
  %975 = vmatprep.subr.mxu0 0.0
  %v976 = vand.u32 %v29, 4294901760
  %v977 = vsub.f32 %v29, %v976
  %978 = vmatpush1.msra.mxu0 %v977
  %979 = vmatprep.subr.mxu0 0.0
  %v980 = vand.u32 %v30, 4294901760
  %v981 = vsub.f32 %v30, %v980
  %982 = vmatpush1.msra.mxu0 %v981
  %983 = vmatprep.subr.mxu0 0.0
  %v984 = vand.u32 %v31, 4294901760
  %v985 = vsub.f32 %v31, %v984
  %986 = vmatpush1.msra.mxu0 %v985
  %987 = vmatprep.subr.mxu0 0.0
  %v988 = vand.u32 %v32, 4294901760
  %v989 = vsub.f32 %v32, %v988
  %990 = vmatpush1.msra.mxu0 %v989
  %991 = vmatprep.subr.mxu0 0.0
  %v992 = vand.u32 %v33, 4294901760
  %v993 = vsub.f32 %v33, %v992
  %994 = vmatpush1.msra.mxu0 %v993
  %995 = vmatprep.subr.mxu0 0.0
  %996 = vmatpush1.msra.mxu0 0.0
  %997 = vmatprep.subr.mxu0 0.0
  %998 = vmatpush1.msra.mxu0 0.0
  %999 = vmatprep.subr.mxu0 0.0
  %1000 = vmatpush1.msra.mxu0 0.0
  %1001 = vmatprep.subr.mxu0 0.0
  %1002 = vmatpush1.msra.mxu0 0.0
  %1003 = vmatprep.subr.mxu0 0.0
  %1004 = vmatpush1.msra.mxu0 0.0
  %1005 = vmatprep.subr.mxu0 0.0
  %1006 = vmatpush1.msra.mxu0 0.0
  %1007 = vmatprep.subr.mxu0 0.0
  %1008 = vmatpush1.msra.mxu0 0.0
  %1009 = vmatprep.subr.mxu0 0.0
  %1010 = vmatpush1.msra.mxu0 0.0
  %1011 = vmatprep.subr.mxu0 0.0
  %1012 = vmatpush1.msra.mxu0 0.0
  %1013 = vmatprep.subr.mxu0 0.0
  %1014 = vmatpush1.msra.mxu0 0.0
  %1015 = vmatprep.subr.mxu0 0.0
  %1016 = vmatpush1.msra.mxu0 0.0
  %1017 = vmatprep.subr.mxu0 0.0
  %1018 = vmatpush1.msra.mxu0 0.0
  %1019 = vmatprep.subr.mxu0 0.0
  %1020 = vmatpush1.msra.mxu0 0.0
  %1021 = vmatprep.subr.mxu0 0.0
  %1022 = vmatpush1.msra.mxu0 0.0
  %1023 = vmatprep.subr.mxu0 0.0
  %1024 = vmatpush1.msra.mxu0 0.0
  %1025 = vmatprep.subr.mxu0 0.0
  %1026 = vmatpush1.msra.mxu0 0.0
  %1027 = vmatprep.mubr.f32.mxu0 0.0
  %v1028 = vand.u32 %v688, 4294901760
  %v1029 = vsub.f32 %v688, %v1028
  %1030 = vmatmul.mubr.f32.gmra.mrb[0].mxu0 %v1029
  %v1031 = vpop.f32.mrb[0].mxu0
  %v1032 = vadd.f32 %v928, %v1031
  %v1033 = vpop.f32.mrb[0].mxu0
  %1034 = vdwg.mxu0
  %1035 = vmatprep.subr.mxu0 0.0
  %v1036 = vand.u32 %v18, 4294901760
  %1037 = vmatpush1.msra.mxu0 %v1036
  %1038 = vmatprep.subr.mxu0 0.0
  %v1039 = vand.u32 %v19, 4294901760
  %1040 = vmatpush1.msra.mxu0 %v1039
  %1041 = vmatprep.subr.mxu0 0.0
  %v1042 = vand.u32 %v20, 4294901760
  %1043 = vmatpush1.msra.mxu0 %v1042
  %1044 = vmatprep.subr.mxu0 0.0
  %v1045 = vand.u32 %v21, 4294901760
  %1046 = vmatpush1.msra.mxu0 %v1045
  %1047 = vmatprep.subr.mxu0 0.0
  %v1048 = vand.u32 %v22, 4294901760
  %1049 = vmatpush1.msra.mxu0 %v1048
  %1050 = vmatprep.subr.mxu0 0.0
  %v1051 = vand.u32 %v23, 4294901760
  %1052 = vmatpush1.msra.mxu0 %v1051
  %1053 = vmatprep.subr.mxu0 0.0
  %v1054 = vand.u32 %v24, 4294901760
  %1055 = vmatpush1.msra.mxu0 %v1054
  %1056 = vmatprep.subr.mxu0 0.0
  %v1057 = vand.u32 %v25, 4294901760
  %1058 = vmatpush1.msra.mxu0 %v1057
  %1059 = vmatprep.subr.mxu0 0.0
  %v1060 = vand.u32 %v26, 4294901760
  %1061 = vmatpush1.msra.mxu0 %v1060
  %1062 = vmatprep.subr.mxu0 0.0
  %v1063 = vand.u32 %v27, 4294901760
  %1064 = vmatpush1.msra.mxu0 %v1063
  %1065 = vmatprep.subr.mxu0 0.0
  %v1066 = vand.u32 %v28, 4294901760
  %1067 = vmatpush1.msra.mxu0 %v1066
  %1068 = vmatprep.subr.mxu0 0.0
  %v1069 = vand.u32 %v29, 4294901760
  %1070 = vmatpush1.msra.mxu0 %v1069
  %1071 = vmatprep.subr.mxu0 0.0
  %v1072 = vand.u32 %v30, 4294901760
  %1073 = vmatpush1.msra.mxu0 %v1072
  %1074 = vmatprep.subr.mxu0 0.0
  %v1075 = vand.u32 %v31, 4294901760
  %1076 = vmatpush1.msra.mxu0 %v1075
  %1077 = vmatprep.subr.mxu0 0.0
  %v1078 = vand.u32 %v32, 4294901760
  %1079 = vmatpush1.msra.mxu0 %v1078
  %1080 = vmatprep.subr.mxu0 0.0
  %v1081 = vand.u32 %v33, 4294901760
  %1082 = vmatpush1.msra.mxu0 %v1081
  %1083 = vmatprep.subr.mxu0 0.0
  %1084 = vmatpush1.msra.mxu0 0.0
  %1085 = vmatprep.subr.mxu0 0.0
  %1086 = vmatpush1.msra.mxu0 0.0
  %1087 = vmatprep.subr.mxu0 0.0
  %1088 = vmatpush1.msra.mxu0 0.0
  %1089 = vmatprep.subr.mxu0 0.0
  %1090 = vmatpush1.msra.mxu0 0.0
  %1091 = vmatprep.subr.mxu0 0.0
  %1092 = vmatpush1.msra.mxu0 0.0
  %1093 = vmatprep.subr.mxu0 0.0
  %1094 = vmatpush1.msra.mxu0 0.0
  %1095 = vmatprep.subr.mxu0 0.0
  %1096 = vmatpush1.msra.mxu0 0.0
  %1097 = vmatprep.subr.mxu0 0.0
  %1098 = vmatpush1.msra.mxu0 0.0
  %1099 = vmatprep.subr.mxu0 0.0
  %1100 = vmatpush1.msra.mxu0 0.0
  %1101 = vmatprep.subr.mxu0 0.0
  %1102 = vmatpush1.msra.mxu0 0.0
  %1103 = vmatprep.subr.mxu0 0.0
  %1104 = vmatpush1.msra.mxu0 0.0
  %1105 = vmatprep.subr.mxu0 0.0
  %1106 = vmatpush1.msra.mxu0 0.0
  %1107 = vmatprep.subr.mxu0 0.0
  %1108 = vmatpush1.msra.mxu0 0.0
  %1109 = vmatprep.subr.mxu0 0.0
  %1110 = vmatpush1.msra.mxu0 0.0
  %1111 = vmatprep.subr.mxu0 0.0
  %1112 = vmatpush1.msra.mxu0 0.0
  %1113 = vmatprep.subr.mxu0 0.0
  %1114 = vmatpush1.msra.mxu0 0.0
  %1115 = vmatprep.mubr.f32.mxu0 0.0
  %v1116 = vand.u32 %v688, 4294901760
  %v1117 = vsub.f32 %v688, %v1116
  %v1118 = vand.u32 %v1117, 4294901760
  %1119 = vmatmul.mubr.f32.gmra.mrb[0].mxu0 %v1118
  %v1120 = vpop.f32.mrb[0].mxu0
  %v1121 = vadd.f32 %v1032, %v1120
  %v1122 = vpop.f32.mrb[0].mxu0
  %1123 = vdwg.mxu0
  %1124 = vmatprep.subr.mxu0 0.0
  %v1125 = vand.u32 %v18, 4294901760
  %v1126 = vsub.f32 %v18, %v1125
  %v1127 = vand.u32 %v1126, 4294901760
  %1128 = vmatpush1.msra.mxu0 %v1127
  %1129 = vmatprep.subr.mxu0 0.0
  %v1130 = vand.u32 %v19, 4294901760
  %v1131 = vsub.f32 %v19, %v1130
  %v1132 = vand.u32 %v1131, 4294901760
  %1133 = vmatpush1.msra.mxu0 %v1132
  %1134 = vmatprep.subr.mxu0 0.0
  %v1135 = vand.u32 %v20, 4294901760
  %v1136 = vsub.f32 %v20, %v1135
  %v1137 = vand.u32 %v1136, 4294901760
  %1138 = vmatpush1.msra.mxu0 %v1137
  %1139 = vmatprep.subr.mxu0 0.0
  %v1140 = vand.u32 %v21, 4294901760
  %v1141 = vsub.f32 %v21, %v1140
  %v1142 = vand.u32 %v1141, 4294901760
  %1143 = vmatpush1.msra.mxu0 %v1142
  %1144 = vmatprep.subr.mxu0 0.0
  %v1145 = vand.u32 %v22, 4294901760
  %v1146 = vsub.f32 %v22, %v1145
  %v1147 = vand.u32 %v1146, 4294901760
  %1148 = vmatpush1.msra.mxu0 %v1147
  %1149 = vmatprep.subr.mxu0 0.0
  %v1150 = vand.u32 %v23, 4294901760
  %v1151 = vsub.f32 %v23, %v1150
  %v1152 = vand.u32 %v1151, 4294901760
  %1153 = vmatpush1.msra.mxu0 %v1152
  %1154 = vmatprep.subr.mxu0 0.0
  %v1155 = vand.u32 %v24, 4294901760
  %v1156 = vsub.f32 %v24, %v1155
  %v1157 = vand.u32 %v1156, 4294901760
  %1158 = vmatpush1.msra.mxu0 %v1157
  %1159 = vmatprep.subr.mxu0 0.0
  %v1160 = vand.u32 %v25, 4294901760
  %v1161 = vsub.f32 %v25, %v1160
  %v1162 = vand.u32 %v1161, 4294901760
  %1163 = vmatpush1.msra.mxu0 %v1162
  %1164 = vmatprep.subr.mxu0 0.0
  %v1165 = vand.u32 %v26, 4294901760
  %v1166 = vsub.f32 %v26, %v1165
  %v1167 = vand.u32 %v1166, 4294901760
  %1168 = vmatpush1.msra.mxu0 %v1167
  %1169 = vmatprep.subr.mxu0 0.0
  %v1170 = vand.u32 %v27, 4294901760
  %v1171 = vsub.f32 %v27, %v1170
  %v1172 = vand.u32 %v1171, 4294901760
  %1173 = vmatpush1.msra.mxu0 %v1172
  %1174 = vmatprep.subr.mxu0 0.0
  %v1175 = vand.u32 %v28, 4294901760
  %v1176 = vsub.f32 %v28, %v1175
  %v1177 = vand.u32 %v1176, 4294901760
  %1178 = vmatpush1.msra.mxu0 %v1177
  %1179 = vmatprep.subr.mxu0 0.0
  %v1180 = vand.u32 %v29, 4294901760
  %v1181 = vsub.f32 %v29, %v1180
  %v1182 = vand.u32 %v1181, 4294901760
  %1183 = vmatpush1.msra.mxu0 %v1182
  %1184 = vmatprep.subr.mxu0 0.0
  %v1185 = vand.u32 %v30, 4294901760
  %v1186 = vsub.f32 %v30, %v1185
  %v1187 = vand.u32 %v1186, 4294901760
  %1188 = vmatpush1.msra.mxu0 %v1187
  %1189 = vmatprep.subr.mxu0 0.0
  %v1190 = vand.u32 %v31, 4294901760
  %v1191 = vsub.f32 %v31, %v1190
  %v1192 = vand.u32 %v1191, 4294901760
  %1193 = vmatpush1.msra.mxu0 %v1192
  %1194 = vmatprep.subr.mxu0 0.0
  %v1195 = vand.u32 %v32, 4294901760
  %v1196 = vsub.f32 %v32, %v1195
  %v1197 = vand.u32 %v1196, 4294901760
  %1198 = vmatpush1.msra.mxu0 %v1197
  %1199 = vmatprep.subr.mxu0 0.0
  %v1200 = vand.u32 %v33, 4294901760
  %v1201 = vsub.f32 %v33, %v1200
  %v1202 = vand.u32 %v1201, 4294901760
  %1203 = vmatpush1.msra.mxu0 %v1202
  %1204 = vmatprep.subr.mxu0 0.0
  %1205 = vmatpush1.msra.mxu0 0.0
  %1206 = vmatprep.subr.mxu0 0.0
  %1207 = vmatpush1.msra.mxu0 0.0
  %1208 = vmatprep.subr.mxu0 0.0
  %1209 = vmatpush1.msra.mxu0 0.0
  %1210 = vmatprep.subr.mxu0 0.0
  %1211 = vmatpush1.msra.mxu0 0.0
  %1212 = vmatprep.subr.mxu0 0.0
  %1213 = vmatpush1.msra.mxu0 0.0
  %1214 = vmatprep.subr.mxu0 0.0
  %1215 = vmatpush1.msra.mxu0 0.0
  %1216 = vmatprep.subr.mxu0 0.0
  %1217 = vmatpush1.msra.mxu0 0.0
  %1218 = vmatprep.subr.mxu0 0.0
  %1219 = vmatpush1.msra.mxu0 0.0
  %1220 = vmatprep.subr.mxu0 0.0
  %1221 = vmatpush1.msra.mxu0 0.0
  %1222 = vmatprep.subr.mxu0 0.0
  %1223 = vmatpush1.msra.mxu0 0.0
  %1224 = vmatprep.subr.mxu0 0.0
  %1225 = vmatpush1.msra.mxu0 0.0
  %1226 = vmatprep.subr.mxu0 0.0
  %1227 = vmatpush1.msra.mxu0 0.0
  %1228 = vmatprep.subr.mxu0 0.0
  %1229 = vmatpush1.msra.mxu0 0.0
  %1230 = vmatprep.subr.mxu0 0.0
  %1231 = vmatpush1.msra.mxu0 0.0
  %1232 = vmatprep.subr.mxu0 0.0
  %1233 = vmatpush1.msra.mxu0 0.0
  %1234 = vmatprep.subr.mxu0 0.0
  %1235 = vmatpush1.msra.mxu0 0.0
  %1236 = vmatprep.mubr.f32.mxu0 0.0
  %v1237 = vand.u32 %v688, 4294901760
  %1238 = vmatmul.mubr.f32.gmra.mrb[0].mxu0 %v1237
  %v1239 = vpop.f32.mrb[0].mxu0
  %v1240 = vadd.f32 %v1121, %v1239
  %v1241 = vpop.f32.mrb[0].mxu0
  %1242 = vdwg.mxu0
  %1243 = vmatprep.subr.mxu0 0.0
  %v1244 = vand.u32 %v18, 4294901760
  %1245 = vmatpush1.msra.mxu0 %v1244
  %1246 = vmatprep.subr.mxu0 0.0
  %v1247 = vand.u32 %v19, 4294901760
  %1248 = vmatpush1.msra.mxu0 %v1247
  %1249 = vmatprep.subr.mxu0 0.0
  %v1250 = vand.u32 %v20, 4294901760
  %1251 = vmatpush1.msra.mxu0 %v1250
  %1252 = vmatprep.subr.mxu0 0.0
  %v1253 = vand.u32 %v21, 4294901760
  %1254 = vmatpush1.msra.mxu0 %v1253
  %1255 = vmatprep.subr.mxu0 0.0
  %v1256 = vand.u32 %v22, 4294901760
  %1257 = vmatpush1.msra.mxu0 %v1256
  %1258 = vmatprep.subr.mxu0 0.0
  %v1259 = vand.u32 %v23, 4294901760
  %1260 = vmatpush1.msra.mxu0 %v1259
  %1261 = vmatprep.subr.mxu0 0.0
  %v1262 = vand.u32 %v24, 4294901760
  %1263 = vmatpush1.msra.mxu0 %v1262
  %1264 = vmatprep.subr.mxu0 0.0
  %v1265 = vand.u32 %v25, 4294901760
  %1266 = vmatpush1.msra.mxu0 %v1265
  %1267 = vmatprep.subr.mxu0 0.0
  %v1268 = vand.u32 %v26, 4294901760
  %1269 = vmatpush1.msra.mxu0 %v1268
  %1270 = vmatprep.subr.mxu0 0.0
  %v1271 = vand.u32 %v27, 4294901760
  %1272 = vmatpush1.msra.mxu0 %v1271
  %1273 = vmatprep.subr.mxu0 0.0
  %v1274 = vand.u32 %v28, 4294901760
  %1275 = vmatpush1.msra.mxu0 %v1274
  %1276 = vmatprep.subr.mxu0 0.0
  %v1277 = vand.u32 %v29, 4294901760
  %1278 = vmatpush1.msra.mxu0 %v1277
  %1279 = vmatprep.subr.mxu0 0.0
  %v1280 = vand.u32 %v30, 4294901760
  %1281 = vmatpush1.msra.mxu0 %v1280
  %1282 = vmatprep.subr.mxu0 0.0
  %v1283 = vand.u32 %v31, 4294901760
  %1284 = vmatpush1.msra.mxu0 %v1283
  %1285 = vmatprep.subr.mxu0 0.0
  %v1286 = vand.u32 %v32, 4294901760
  %1287 = vmatpush1.msra.mxu0 %v1286
  %1288 = vmatprep.subr.mxu0 0.0
  %v1289 = vand.u32 %v33, 4294901760
  %1290 = vmatpush1.msra.mxu0 %v1289
  %1291 = vmatprep.subr.mxu0 0.0
  %1292 = vmatpush1.msra.mxu0 0.0
  %1293 = vmatprep.subr.mxu0 0.0
  %1294 = vmatpush1.msra.mxu0 0.0
  %1295 = vmatprep.subr.mxu0 0.0
  %1296 = vmatpush1.msra.mxu0 0.0
  %1297 = vmatprep.subr.mxu0 0.0
  %1298 = vmatpush1.msra.mxu0 0.0
  %1299 = vmatprep.subr.mxu0 0.0
  %1300 = vmatpush1.msra.mxu0 0.0
  %1301 = vmatprep.subr.mxu0 0.0
  %1302 = vmatpush1.msra.mxu0 0.0
  %1303 = vmatprep.subr.mxu0 0.0
  %1304 = vmatpush1.msra.mxu0 0.0
  %1305 = vmatprep.subr.mxu0 0.0
  %1306 = vmatpush1.msra.mxu0 0.0
  %1307 = vmatprep.subr.mxu0 0.0
  %1308 = vmatpush1.msra.mxu0 0.0
  %1309 = vmatprep.subr.mxu0 0.0
  %1310 = vmatpush1.msra.mxu0 0.0
  %1311 = vmatprep.subr.mxu0 0.0
  %1312 = vmatpush1.msra.mxu0 0.0
  %1313 = vmatprep.subr.mxu0 0.0
  %1314 = vmatpush1.msra.mxu0 0.0
  %1315 = vmatprep.subr.mxu0 0.0
  %1316 = vmatpush1.msra.mxu0 0.0
  %1317 = vmatprep.subr.mxu0 0.0
  %1318 = vmatpush1.msra.mxu0 0.0
  %1319 = vmatprep.subr.mxu0 0.0
  %1320 = vmatpush1.msra.mxu0 0.0
  %1321 = vmatprep.subr.mxu0 0.0
  %1322 = vmatpush1.msra.mxu0 0.0
  %1323 = vmatprep.mubr.f32.mxu0 0.0
  %v1324 = vand.u32 %v688, 4294901760
  %1325 = vmatmul.mubr.f32.gmra.mrb[0].mxu0 %v1324
  %v1326 = vpop.f32.mrb[0].mxu0
  %v1327 = vadd.f32 %v1240, %v1326
  %v1328 = vpop.f32.mrb[0].mxu0
  %1329 = vdwg.mxu0
  %v1330 = vld [vmem:[%s2] sm:$0xff]
  %v1331 = vld [vmem:[%s2 + $0x8] sm:$0xff]
  %v1332 = vld [vmem:[%s2 + $0x10] sm:$0xff]
  %v1333 = vld [vmem:[%s2 + $0x18] sm:$0xff]
  %v1334 = vld [vmem:[%s2 + $0x20] sm:$0xff]
  %v1335 = vld [vmem:[%s2 + $0x28] sm:$0xff]
  %v1336 = vld [vmem:[%s2 + $0x30] sm:$0xff]
  %v1337 = vld [vmem:[%s2 + $0x38] sm:$0xff]
  %v1338 = vld [vmem:[%s2 + $0x40] sm:$0xff]
  %v1339 = vld [vmem:[%s2 + $0x48] sm:$0xff]
  %v1340 = vld [vmem:[%s2 + $0x50] sm:$0xff]
  %v1341 = vld [vmem:[%s2 + $0x58] sm:$0xff]
  %v1342 = vld [vmem:[%s2 + $0x60] sm:$0xff]
  %v1343 = vld [vmem:[%s2 + $0x68] sm:$0xff]
  %v1344 = vld [vmem:[%s2 + $0x70] sm:$0xff]
  %v1345 = vld [vmem:[%s2 + $0x78] sm:$0xff]
  %v1346 = vld [vmem:[%s2 + $0x80] sm:$0xff]
  %v1347 = vld [vmem:[%s2 + $0x88] sm:$0xff]
  %v1348 = vld [vmem:[%s2 + $0x90] sm:$0xff]
  %v1349 = vld [vmem:[%s2 + $0x98] sm:$0xff]
  %v1350 = vld [vmem:[%s2 + $0xa0] sm:$0xff]
  %v1351 = vld [vmem:[%s2 + $0xa8] sm:$0xff]
  %v1352 = vld [vmem:[%s2 + $0xb0] sm:$0xff]
  %v1353 = vld [vmem:[%s2 + $0xb8] sm:$0xff]
  %v1354 = vld [vmem:[%s2 + $0xc0] sm:$0xff]
  %v1355 = vld [vmem:[%s2 + $0xc8] sm:$0xff]
  %v1356 = vld [vmem:[%s2 + $0xd0] sm:$0xff]
  %v1357 = vld [vmem:[%s2 + $0xd8] sm:$0xff]
  %v1358 = vld [vmem:[%s2 + $0xe0] sm:$0xff]
  %v1359 = vld [vmem:[%s2 + $0xe8] sm:$0xff]
  %v1360 = vld [vmem:[%s2 + $0xf0] sm:$0xff]
  %v1361 = vld [vmem:[%s2 + $0xf8] sm:$0xff]
  %v1362 = vld [vmem:[%s3] sm:$0x1]
  %v1364 = vlaneseq
  %v1365 = vshrl.u32 %v1364, 7
  %v1366 = vsub.s32 0, %v1365
  %v1367 = vrot.slane %v1362, %v1366
  %1369 = vmatprep.subr.mxu0 0.0
  %v1370 = vand.u32 %v1330, 4294901760
  %1371 = vmatpush1.msra.mxu0 %v1370
  %1372 = vmatprep.subr.mxu0 0.0
  %v1373 = vand.u32 %v1331, 4294901760
  %1374 = vmatpush1.msra.mxu0 %v1373
  %1375 = vmatprep.subr.mxu0 0.0
  %v1376 = vand.u32 %v1332, 4294901760
  %1377 = vmatpush1.msra.mxu0 %v1376
  %1378 = vmatprep.subr.mxu0 0.0
  %v1379 = vand.u32 %v1333, 4294901760
  %1380 = vmatpush1.msra.mxu0 %v1379
  %1381 = vmatprep.subr.mxu0 0.0
  %v1382 = vand.u32 %v1334, 4294901760
  %1383 = vmatpush1.msra.mxu0 %v1382
  %1384 = vmatprep.subr.mxu0 0.0
  %v1385 = vand.u32 %v1335, 4294901760
  %1386 = vmatpush1.msra.mxu0 %v1385
  %1387 = vmatprep.subr.mxu0 0.0
  %v1388 = vand.u32 %v1336, 4294901760
  %1389 = vmatpush1.msra.mxu0 %v1388
  %1390 = vmatprep.subr.mxu0 0.0
  %v1391 = vand.u32 %v1337, 4294901760
  %1392 = vmatpush1.msra.mxu0 %v1391
  %1393 = vmatprep.subr.mxu0 0.0
  %v1394 = vand.u32 %v1338, 4294901760
  %1395 = vmatpush1.msra.mxu0 %v1394
  %1396 = vmatprep.subr.mxu0 0.0
  %v1397 = vand.u32 %v1339, 4294901760
  %1398 = vmatpush1.msra.mxu0 %v1397
  %1399 = vmatprep.subr.mxu0 0.0
  %v1400 = vand.u32 %v1340, 4294901760
  %1401 = vmatpush1.msra.mxu0 %v1400
  %1402 = vmatprep.subr.mxu0 0.0
  %v1403 = vand.u32 %v1341, 4294901760
  %1404 = vmatpush1.msra.mxu0 %v1403
  %1405 = vmatprep.subr.mxu0 0.0
  %v1406 = vand.u32 %v1342, 4294901760
  %1407 = vmatpush1.msra.mxu0 %v1406
  %1408 = vmatprep.subr.mxu0 0.0
  %v1409 = vand.u32 %v1343, 4294901760
  %1410 = vmatpush1.msra.mxu0 %v1409
  %1411 = vmatprep.subr.mxu0 0.0
  %v1412 = vand.u32 %v1344, 4294901760
  %1413 = vmatpush1.msra.mxu0 %v1412
  %1414 = vmatprep.subr.mxu0 0.0
  %v1415 = vand.u32 %v1345, 4294901760
  %1416 = vmatpush1.msra.mxu0 %v1415
  %1417 = vmatprep.subr.mxu0 0.0
  %v1418 = vand.u32 %v1346, 4294901760
  %1419 = vmatpush1.msra.mxu0 %v1418
  %1420 = vmatprep.subr.mxu0 0.0
  %v1421 = vand.u32 %v1347, 4294901760
  %1422 = vmatpush1.msra.mxu0 %v1421
  %1423 = vmatprep.subr.mxu0 0.0
  %v1424 = vand.u32 %v1348, 4294901760
  %1425 = vmatpush1.msra.mxu0 %v1424
  %1426 = vmatprep.subr.mxu0 0.0
  %v1427 = vand.u32 %v1349, 4294901760
  %1428 = vmatpush1.msra.mxu0 %v1427
  %1429 = vmatprep.subr.mxu0 0.0
  %v1430 = vand.u32 %v1350, 4294901760
  %1431 = vmatpush1.msra.mxu0 %v1430
  %1432 = vmatprep.subr.mxu0 0.0
  %v1433 = vand.u32 %v1351, 4294901760
  %1434 = vmatpush1.msra.mxu0 %v1433
  %1435 = vmatprep.subr.mxu0 0.0
  %v1436 = vand.u32 %v1352, 4294901760
  %1437 = vmatpush1.msra.mxu0 %v1436
  %1438 = vmatprep.subr.mxu0 0.0
  %v1439 = vand.u32 %v1353, 4294901760
  %1440 = vmatpush1.msra.mxu0 %v1439
  %1441 = vmatprep.subr.mxu0 0.0
  %v1442 = vand.u32 %v1354, 4294901760
  %1443 = vmatpush1.msra.mxu0 %v1442
  %1444 = vmatprep.subr.mxu0 0.0
  %v1445 = vand.u32 %v1355, 4294901760
  %1446 = vmatpush1.msra.mxu0 %v1445
  %1447 = vmatprep.subr.mxu0 0.0
  %v1448 = vand.u32 %v1356, 4294901760
  %1449 = vmatpush1.msra.mxu0 %v1448
  %1450 = vmatprep.subr.mxu0 0.0
  %v1451 = vand.u32 %v1357, 4294901760
  %1452 = vmatpush1.msra.mxu0 %v1451
  %1453 = vmatprep.subr.mxu0 0.0
  %v1454 = vand.u32 %v1358, 4294901760
  %1455 = vmatpush1.msra.mxu0 %v1454
  %1456 = vmatprep.subr.mxu0 0.0
  %v1457 = vand.u32 %v1359, 4294901760
  %1458 = vmatpush1.msra.mxu0 %v1457
  %1459 = vmatprep.subr.mxu0 0.0
  %v1460 = vand.u32 %v1360, 4294901760
  %1461 = vmatpush1.msra.mxu0 %v1460
  %1462 = vmatprep.subr.mxu0 0.0
  %v1463 = vand.u32 %v1361, 4294901760
  %1464 = vmatpush1.msra.mxu0 %v1463
  %v1465 = vand.u32 %v1327, 4294901760
  %v1466 = vsub.f32 %v1327, %v1465
  %v1467 = vand.u32 %v1466, 4294901760
  %v1468 = vsub.f32 %v1466, %v1467
  %v1469 = vand.u32 %v1468, 4294901760
  %1470 = vmatprep.mubr.f32.mxu0 %v1469
  %v1471 = vand.u32 %v680, 4294901760
  %v1472 = vsub.f32 %v680, %v1471
  %v1473 = vand.u32 %v1472, 4294901760
  %v1474 = vsub.f32 %v1472, %v1473
  %v1475 = vand.u32 %v1474, 4294901760
  %1476 = vmatmul.mubr.f32.gmra.mrb[0].mxu0 %v1475
  %v1477 = vpop.f32.mrb[0].mxu0
  %v1478 = vadd.f32 %v1367, %v1477
  %v1479 = vpop.f32.mrb[0].mxu0
  %1480 = vdwg.mxu0
  %1481 = vmatprep.subr.mxu0 0.0
  %v1482 = vand.u32 %v1330, 4294901760
  %v1483 = vsub.f32 %v1330, %v1482
  %v1484 = vand.u32 %v1483, 4294901760
  %v1485 = vsub.f32 %v1483, %v1484
  %v1486 = vand.u32 %v1485, 4294901760
  %1487 = vmatpush1.msra.mxu0 %v1486
  %1488 = vmatprep.subr.mxu0 0.0
  %v1489 = vand.u32 %v1331, 4294901760
  %v1490 = vsub.f32 %v1331, %v1489
  %v1491 = vand.u32 %v1490, 4294901760
  %v1492 = vsub.f32 %v1490, %v1491
  %v1493 = vand.u32 %v1492, 4294901760
  %1494 = vmatpush1.msra.mxu0 %v1493
  %1495 = vmatprep.subr.mxu0 0.0
  %v1496 = vand.u32 %v1332, 4294901760
  %v1497 = vsub.f32 %v1332, %v1496
  %v1498 = vand.u32 %v1497, 4294901760
  %v1499 = vsub.f32 %v1497, %v1498
  %v1500 = vand.u32 %v1499, 4294901760
  %1501 = vmatpush1.msra.mxu0 %v1500
  %1502 = vmatprep.subr.mxu0 0.0
  %v1503 = vand.u32 %v1333, 4294901760
  %v1504 = vsub.f32 %v1333, %v1503
  %v1505 = vand.u32 %v1504, 4294901760
  %v1506 = vsub.f32 %v1504, %v1505
  %v1507 = vand.u32 %v1506, 4294901760
  %1508 = vmatpush1.msra.mxu0 %v1507
  %1509 = vmatprep.subr.mxu0 0.0
  %v1510 = vand.u32 %v1334, 4294901760
  %v1511 = vsub.f32 %v1334, %v1510
  %v1512 = vand.u32 %v1511, 4294901760
  %v1513 = vsub.f32 %v1511, %v1512
  %v1514 = vand.u32 %v1513, 4294901760
  %1515 = vmatpush1.msra.mxu0 %v1514
  %1516 = vmatprep.subr.mxu0 0.0
  %v1517 = vand.u32 %v1335, 4294901760
  %v1518 = vsub.f32 %v1335, %v1517
  %v1519 = vand.u32 %v1518, 4294901760
  %v1520 = vsub.f32 %v1518, %v1519
  %v1521 = vand.u32 %v1520, 4294901760
  %1522 = vmatpush1.msra.mxu0 %v1521
  %1523 = vmatprep.subr.mxu0 0.0
  %v1524 = vand.u32 %v1336, 4294901760
  %v1525 = vsub.f32 %v1336, %v1524
  %v1526 = vand.u32 %v1525, 4294901760
  %v1527 = vsub.f32 %v1525, %v1526
  %v1528 = vand.u32 %v1527, 4294901760
  %1529 = vmatpush1.msra.mxu0 %v1528
  %1530 = vmatprep.subr.mxu0 0.0
  %v1531 = vand.u32 %v1337, 4294901760
  %v1532 = vsub.f32 %v1337, %v1531
  %v1533 = vand.u32 %v1532, 4294901760
  %v1534 = vsub.f32 %v1532, %v1533
  %v1535 = vand.u32 %v1534, 4294901760
  %1536 = vmatpush1.msra.mxu0 %v1535
  %1537 = vmatprep.subr.mxu0 0.0
  %v1538 = vand.u32 %v1338, 4294901760
  %v1539 = vsub.f32 %v1338, %v1538
  %v1540 = vand.u32 %v1539, 4294901760
  %v1541 = vsub.f32 %v1539, %v1540
  %v1542 = vand.u32 %v1541, 4294901760
  %1543 = vmatpush1.msra.mxu0 %v1542
  %1544 = vmatprep.subr.mxu0 0.0
  %v1545 = vand.u32 %v1339, 4294901760
  %v1546 = vsub.f32 %v1339, %v1545
  %v1547 = vand.u32 %v1546, 4294901760
  %v1548 = vsub.f32 %v1546, %v1547
  %v1549 = vand.u32 %v1548, 4294901760
  %1550 = vmatpush1.msra.mxu0 %v1549
  %1551 = vmatprep.subr.mxu0 0.0
  %v1552 = vand.u32 %v1340, 4294901760
  %v1553 = vsub.f32 %v1340, %v1552
  %v1554 = vand.u32 %v1553, 4294901760
  %v1555 = vsub.f32 %v1553, %v1554
  %v1556 = vand.u32 %v1555, 4294901760
  %1557 = vmatpush1.msra.mxu0 %v1556
  %1558 = vmatprep.subr.mxu0 0.0
  %v1559 = vand.u32 %v1341, 4294901760
  %v1560 = vsub.f32 %v1341, %v1559
  %v1561 = vand.u32 %v1560, 4294901760
  %v1562 = vsub.f32 %v1560, %v1561
  %v1563 = vand.u32 %v1562, 4294901760
  %1564 = vmatpush1.msra.mxu0 %v1563
  %1565 = vmatprep.subr.mxu0 0.0
  %v1566 = vand.u32 %v1342, 4294901760
  %v1567 = vsub.f32 %v1342, %v1566
  %v1568 = vand.u32 %v1567, 4294901760
  %v1569 = vsub.f32 %v1567, %v1568
  %v1570 = vand.u32 %v1569, 4294901760
  %1571 = vmatpush1.msra.mxu0 %v1570
  %1572 = vmatprep.subr.mxu0 0.0
  %v1573 = vand.u32 %v1343, 4294901760
  %v1574 = vsub.f32 %v1343, %v1573
  %v1575 = vand.u32 %v1574, 4294901760
  %v1576 = vsub.f32 %v1574, %v1575
  %v1577 = vand.u32 %v1576, 4294901760
  %1578 = vmatpush1.msra.mxu0 %v1577
  %1579 = vmatprep.subr.mxu0 0.0
  %v1580 = vand.u32 %v1344, 4294901760
  %v1581 = vsub.f32 %v1344, %v1580
  %v1582 = vand.u32 %v1581, 4294901760
  %v1583 = vsub.f32 %v1581, %v1582
  %v1584 = vand.u32 %v1583, 4294901760
  %1585 = vmatpush1.msra.mxu0 %v1584
  %1586 = vmatprep.subr.mxu0 0.0
  %v1587 = vand.u32 %v1345, 4294901760
  %v1588 = vsub.f32 %v1345, %v1587
  %v1589 = vand.u32 %v1588, 4294901760
  %v1590 = vsub.f32 %v1588, %v1589
  %v1591 = vand.u32 %v1590, 4294901760
  %1592 = vmatpush1.msra.mxu0 %v1591
  %1593 = vmatprep.subr.mxu0 0.0
  %v1594 = vand.u32 %v1346, 4294901760
  %v1595 = vsub.f32 %v1346, %v1594
  %v1596 = vand.u32 %v1595, 4294901760
  %v1597 = vsub.f32 %v1595, %v1596
  %v1598 = vand.u32 %v1597, 4294901760
  %1599 = vmatpush1.msra.mxu0 %v1598
  %1600 = vmatprep.subr.mxu0 0.0
  %v1601 = vand.u32 %v1347, 4294901760
  %v1602 = vsub.f32 %v1347, %v1601
  %v1603 = vand.u32 %v1602, 4294901760
  %v1604 = vsub.f32 %v1602, %v1603
  %v1605 = vand.u32 %v1604, 4294901760
  %1606 = vmatpush1.msra.mxu0 %v1605
  %1607 = vmatprep.subr.mxu0 0.0
  %v1608 = vand.u32 %v1348, 4294901760
  %v1609 = vsub.f32 %v1348, %v1608
  %v1610 = vand.u32 %v1609, 4294901760
  %v1611 = vsub.f32 %v1609, %v1610
  %v1612 = vand.u32 %v1611, 4294901760
  %1613 = vmatpush1.msra.mxu0 %v1612
  %1614 = vmatprep.subr.mxu0 0.0
  %v1615 = vand.u32 %v1349, 4294901760
  %v1616 = vsub.f32 %v1349, %v1615
  %v1617 = vand.u32 %v1616, 4294901760
  %v1618 = vsub.f32 %v1616, %v1617
  %v1619 = vand.u32 %v1618, 4294901760
  %1620 = vmatpush1.msra.mxu0 %v1619
  %1621 = vmatprep.subr.mxu0 0.0
  %v1622 = vand.u32 %v1350, 4294901760
  %v1623 = vsub.f32 %v1350, %v1622
  %v1624 = vand.u32 %v1623, 4294901760
  %v1625 = vsub.f32 %v1623, %v1624
  %v1626 = vand.u32 %v1625, 4294901760
  %1627 = vmatpush1.msra.mxu0 %v1626
  %1628 = vmatprep.subr.mxu0 0.0
  %v1629 = vand.u32 %v1351, 4294901760
  %v1630 = vsub.f32 %v1351, %v1629
  %v1631 = vand.u32 %v1630, 4294901760
  %v1632 = vsub.f32 %v1630, %v1631
  %v1633 = vand.u32 %v1632, 4294901760
  %1634 = vmatpush1.msra.mxu0 %v1633
  %1635 = vmatprep.subr.mxu0 0.0
  %v1636 = vand.u32 %v1352, 4294901760
  %v1637 = vsub.f32 %v1352, %v1636
  %v1638 = vand.u32 %v1637, 4294901760
  %v1639 = vsub.f32 %v1637, %v1638
  %v1640 = vand.u32 %v1639, 4294901760
  %1641 = vmatpush1.msra.mxu0 %v1640
  %1642 = vmatprep.subr.mxu0 0.0
  %v1643 = vand.u32 %v1353, 4294901760
  %v1644 = vsub.f32 %v1353, %v1643
  %v1645 = vand.u32 %v1644, 4294901760
  %v1646 = vsub.f32 %v1644, %v1645
  %v1647 = vand.u32 %v1646, 4294901760
  %1648 = vmatpush1.msra.mxu0 %v1647
  %1649 = vmatprep.subr.mxu0 0.0
  %v1650 = vand.u32 %v1354, 4294901760
  %v1651 = vsub.f32 %v1354, %v1650
  %v1652 = vand.u32 %v1651, 4294901760
  %v1653 = vsub.f32 %v1651, %v1652
  %v1654 = vand.u32 %v1653, 4294901760
  %1655 = vmatpush1.msra.mxu0 %v1654
  %1656 = vmatprep.subr.mxu0 0.0
  %v1657 = vand.u32 %v1355, 4294901760
  %v1658 = vsub.f32 %v1355, %v1657
  %v1659 = vand.u32 %v1658, 4294901760
  %v1660 = vsub.f32 %v1658, %v1659
  %v1661 = vand.u32 %v1660, 4294901760
  %1662 = vmatpush1.msra.mxu0 %v1661
  %1663 = vmatprep.subr.mxu0 0.0
  %v1664 = vand.u32 %v1356, 4294901760
  %v1665 = vsub.f32 %v1356, %v1664
  %v1666 = vand.u32 %v1665, 4294901760
  %v1667 = vsub.f32 %v1665, %v1666
  %v1668 = vand.u32 %v1667, 4294901760
  %1669 = vmatpush1.msra.mxu0 %v1668
  %1670 = vmatprep.subr.mxu0 0.0
  %v1671 = vand.u32 %v1357, 4294901760
  %v1672 = vsub.f32 %v1357, %v1671
  %v1673 = vand.u32 %v1672, 4294901760
  %v1674 = vsub.f32 %v1672, %v1673
  %v1675 = vand.u32 %v1674, 4294901760
  %1676 = vmatpush1.msra.mxu0 %v1675
  %1677 = vmatprep.subr.mxu0 0.0
  %v1678 = vand.u32 %v1358, 4294901760
  %v1679 = vsub.f32 %v1358, %v1678
  %v1680 = vand.u32 %v1679, 4294901760
  %v1681 = vsub.f32 %v1679, %v1680
  %v1682 = vand.u32 %v1681, 4294901760
  %1683 = vmatpush1.msra.mxu0 %v1682
  %1684 = vmatprep.subr.mxu0 0.0
  %v1685 = vand.u32 %v1359, 4294901760
  %v1686 = vsub.f32 %v1359, %v1685
  %v1687 = vand.u32 %v1686, 4294901760
  %v1688 = vsub.f32 %v1686, %v1687
  %v1689 = vand.u32 %v1688, 4294901760
  %1690 = vmatpush1.msra.mxu0 %v1689
  %1691 = vmatprep.subr.mxu0 0.0
  %v1692 = vand.u32 %v1360, 4294901760
  %v1693 = vsub.f32 %v1360, %v1692
  %v1694 = vand.u32 %v1693, 4294901760
  %v1695 = vsub.f32 %v1693, %v1694
  %v1696 = vand.u32 %v1695, 4294901760
  %1697 = vmatpush1.msra.mxu0 %v1696
  %1698 = vmatprep.subr.mxu0 0.0
  %v1699 = vand.u32 %v1361, 4294901760
  %v1700 = vsub.f32 %v1361, %v1699
  %v1701 = vand.u32 %v1700, 4294901760
  %v1702 = vsub.f32 %v1700, %v1701
  %v1703 = vand.u32 %v1702, 4294901760
  %1704 = vmatpush1.msra.mxu0 %v1703
  %v1705 = vand.u32 %v1327, 4294901760
  %1706 = vmatprep.mubr.f32.mxu0 %v1705
  %v1707 = vand.u32 %v680, 4294901760
  %1708 = vmatmul.mubr.f32.gmra.mrb[0].mxu0 %v1707
  %v1709 = vpop.f32.mrb[0].mxu0
  %v1710 = vadd.f32 %v1478, %v1709
  %v1711 = vpop.f32.mrb[0].mxu0
  %1712 = vdwg.mxu0
  %1713 = vmatprep.subr.mxu0 0.0
  %v1714 = vand.u32 %v1330, 4294901760
  %v1715 = vsub.f32 %v1330, %v1714
  %1716 = vmatpush1.msra.mxu0 %v1715
  %1717 = vmatprep.subr.mxu0 0.0
  %v1718 = vand.u32 %v1331, 4294901760
  %v1719 = vsub.f32 %v1331, %v1718
  %1720 = vmatpush1.msra.mxu0 %v1719
  %1721 = vmatprep.subr.mxu0 0.0
  %v1722 = vand.u32 %v1332, 4294901760
  %v1723 = vsub.f32 %v1332, %v1722
  %1724 = vmatpush1.msra.mxu0 %v1723
  %1725 = vmatprep.subr.mxu0 0.0
  %v1726 = vand.u32 %v1333, 4294901760
  %v1727 = vsub.f32 %v1333, %v1726
  %1728 = vmatpush1.msra.mxu0 %v1727
  %1729 = vmatprep.subr.mxu0 0.0
  %v1730 = vand.u32 %v1334, 4294901760
  %v1731 = vsub.f32 %v1334, %v1730
  %1732 = vmatpush1.msra.mxu0 %v1731
  %1733 = vmatprep.subr.mxu0 0.0
  %v1734 = vand.u32 %v1335, 4294901760
  %v1735 = vsub.f32 %v1335, %v1734
  %1736 = vmatpush1.msra.mxu0 %v1735
  %1737 = vmatprep.subr.mxu0 0.0
  %v1738 = vand.u32 %v1336, 4294901760
  %v1739 = vsub.f32 %v1336, %v1738
  %1740 = vmatpush1.msra.mxu0 %v1739
  %1741 = vmatprep.subr.mxu0 0.0
  %v1742 = vand.u32 %v1337, 4294901760
  %v1743 = vsub.f32 %v1337, %v1742
  %1744 = vmatpush1.msra.mxu0 %v1743
  %1745 = vmatprep.subr.mxu0 0.0
  %v1746 = vand.u32 %v1338, 4294901760
  %v1747 = vsub.f32 %v1338, %v1746
  %1748 = vmatpush1.msra.mxu0 %v1747
  %1749 = vmatprep.subr.mxu0 0.0
  %v1750 = vand.u32 %v1339, 4294901760
  %v1751 = vsub.f32 %v1339, %v1750
  %1752 = vmatpush1.msra.mxu0 %v1751
  %1753 = vmatprep.subr.mxu0 0.0
  %v1754 = vand.u32 %v1340, 4294901760
  %v1755 = vsub.f32 %v1340, %v1754
  %1756 = vmatpush1.msra.mxu0 %v1755
  %1757 = vmatprep.subr.mxu0 0.0
  %v1758 = vand.u32 %v1341, 4294901760
  %v1759 = vsub.f32 %v1341, %v1758
  %1760 = vmatpush1.msra.mxu0 %v1759
  %1761 = vmatprep.subr.mxu0 0.0
  %v1762 = vand.u32 %v1342, 4294901760
  %v1763 = vsub.f32 %v1342, %v1762
  %1764 = vmatpush1.msra.mxu0 %v1763
  %1765 = vmatprep.subr.mxu0 0.0
  %v1766 = vand.u32 %v1343, 4294901760
  %v1767 = vsub.f32 %v1343, %v1766
  %1768 = vmatpush1.msra.mxu0 %v1767
  %1769 = vmatprep.subr.mxu0 0.0
  %v1770 = vand.u32 %v1344, 4294901760
  %v1771 = vsub.f32 %v1344, %v1770
  %1772 = vmatpush1.msra.mxu0 %v1771
  %1773 = vmatprep.subr.mxu0 0.0
  %v1774 = vand.u32 %v1345, 4294901760
  %v1775 = vsub.f32 %v1345, %v1774
  %1776 = vmatpush1.msra.mxu0 %v1775
  %1777 = vmatprep.subr.mxu0 0.0
  %v1778 = vand.u32 %v1346, 4294901760
  %v1779 = vsub.f32 %v1346, %v1778
  %1780 = vmatpush1.msra.mxu0 %v1779
  %1781 = vmatprep.subr.mxu0 0.0
  %v1782 = vand.u32 %v1347, 4294901760
  %v1783 = vsub.f32 %v1347, %v1782
  %1784 = vmatpush1.msra.mxu0 %v1783
  %1785 = vmatprep.subr.mxu0 0.0
  %v1786 = vand.u32 %v1348, 4294901760
  %v1787 = vsub.f32 %v1348, %v1786
  %1788 = vmatpush1.msra.mxu0 %v1787
  %1789 = vmatprep.subr.mxu0 0.0
  %v1790 = vand.u32 %v1349, 4294901760
  %v1791 = vsub.f32 %v1349, %v1790
  %1792 = vmatpush1.msra.mxu0 %v1791
  %1793 = vmatprep.subr.mxu0 0.0
  %v1794 = vand.u32 %v1350, 4294901760
  %v1795 = vsub.f32 %v1350, %v1794
  %1796 = vmatpush1.msra.mxu0 %v1795
  %1797 = vmatprep.subr.mxu0 0.0
  %v1798 = vand.u32 %v1351, 4294901760
  %v1799 = vsub.f32 %v1351, %v1798
  %1800 = vmatpush1.msra.mxu0 %v1799
  %1801 = vmatprep.subr.mxu0 0.0
  %v1802 = vand.u32 %v1352, 4294901760
  %v1803 = vsub.f32 %v1352, %v1802
  %1804 = vmatpush1.msra.mxu0 %v1803
  %1805 = vmatprep.subr.mxu0 0.0
  %v1806 = vand.u32 %v1353, 4294901760
  %v1807 = vsub.f32 %v1353, %v1806
  %1808 = vmatpush1.msra.mxu0 %v1807
  %1809 = vmatprep.subr.mxu0 0.0
  %v1810 = vand.u32 %v1354, 4294901760
  %v1811 = vsub.f32 %v1354, %v1810
  %1812 = vmatpush1.msra.mxu0 %v1811
  %1813 = vmatprep.subr.mxu0 0.0
  %v1814 = vand.u32 %v1355, 4294901760
  %v1815 = vsub.f32 %v1355, %v1814
  %1816 = vmatpush1.msra.mxu0 %v1815
  %1817 = vmatprep.subr.mxu0 0.0
  %v1818 = vand.u32 %v1356, 4294901760
  %v1819 = vsub.f32 %v1356, %v1818
  %1820 = vmatpush1.msra.mxu0 %v1819
  %1821 = vmatprep.subr.mxu0 0.0
  %v1822 = vand.u32 %v1357, 4294901760
  %v1823 = vsub.f32 %v1357, %v1822
  %1824 = vmatpush1.msra.mxu0 %v1823
  %1825 = vmatprep.subr.mxu0 0.0
  %v1826 = vand.u32 %v1358, 4294901760
  %v1827 = vsub.f32 %v1358, %v1826
  %1828 = vmatpush1.msra.mxu0 %v1827
  %1829 = vmatprep.subr.mxu0 0.0
  %v1830 = vand.u32 %v1359, 4294901760
  %v1831 = vsub.f32 %v1359, %v1830
  %1832 = vmatpush1.msra.mxu0 %v1831
  %1833 = vmatprep.subr.mxu0 0.0
  %v1834 = vand.u32 %v1360, 4294901760
  %v1835 = vsub.f32 %v1360, %v1834
  %1836 = vmatpush1.msra.mxu0 %v1835
  %1837 = vmatprep.subr.mxu0 0.0
  %v1838 = vand.u32 %v1361, 4294901760
  %v1839 = vsub.f32 %v1361, %v1838
  %1840 = vmatpush1.msra.mxu0 %v1839
  %v1841 = vand.u32 %v1327, 4294901760
  %v1842 = vsub.f32 %v1327, %v1841
  %1843 = vmatprep.mubr.f32.mxu0 %v1842
  %v1844 = vand.u32 %v680, 4294901760
  %v1845 = vsub.f32 %v680, %v1844
  %1846 = vmatmul.mubr.f32.gmra.mrb[0].mxu0 %v1845
  %v1847 = vpop.f32.mrb[0].mxu0
  %v1848 = vadd.f32 %v1710, %v1847
  %v1849 = vpop.f32.mrb[0].mxu0
  %1850 = vdwg.mxu0
  %1851 = vmatprep.subr.mxu0 0.0
  %v1852 = vand.u32 %v1330, 4294901760
  %1853 = vmatpush1.msra.mxu0 %v1852
  %1854 = vmatprep.subr.mxu0 0.0
  %v1855 = vand.u32 %v1331, 4294901760
  %1856 = vmatpush1.msra.mxu0 %v1855
  %1857 = vmatprep.subr.mxu0 0.0
  %v1858 = vand.u32 %v1332, 4294901760
  %1859 = vmatpush1.msra.mxu0 %v1858
  %1860 = vmatprep.subr.mxu0 0.0
  %v1861 = vand.u32 %v1333, 4294901760
  %1862 = vmatpush1.msra.mxu0 %v1861
  %1863 = vmatprep.subr.mxu0 0.0
  %v1864 = vand.u32 %v1334, 4294901760
  %1865 = vmatpush1.msra.mxu0 %v1864
  %1866 = vmatprep.subr.mxu0 0.0
  %v1867 = vand.u32 %v1335, 4294901760
  %1868 = vmatpush1.msra.mxu0 %v1867
  %1869 = vmatprep.subr.mxu0 0.0
  %v1870 = vand.u32 %v1336, 4294901760
  %1871 = vmatpush1.msra.mxu0 %v1870
  %1872 = vmatprep.subr.mxu0 0.0
  %v1873 = vand.u32 %v1337, 4294901760
  %1874 = vmatpush1.msra.mxu0 %v1873
  %1875 = vmatprep.subr.mxu0 0.0
  %v1876 = vand.u32 %v1338, 4294901760
  %1877 = vmatpush1.msra.mxu0 %v1876
  %1878 = vmatprep.subr.mxu0 0.0
  %v1879 = vand.u32 %v1339, 4294901760
  %1880 = vmatpush1.msra.mxu0 %v1879
  %1881 = vmatprep.subr.mxu0 0.0
  %v1882 = vand.u32 %v1340, 4294901760
  %1883 = vmatpush1.msra.mxu0 %v1882
  %1884 = vmatprep.subr.mxu0 0.0
  %v1885 = vand.u32 %v1341, 4294901760
  %1886 = vmatpush1.msra.mxu0 %v1885
  %1887 = vmatprep.subr.mxu0 0.0
  %v1888 = vand.u32 %v1342, 4294901760
  %1889 = vmatpush1.msra.mxu0 %v1888
  %1890 = vmatprep.subr.mxu0 0.0
  %v1891 = vand.u32 %v1343, 4294901760
  %1892 = vmatpush1.msra.mxu0 %v1891
  %1893 = vmatprep.subr.mxu0 0.0
  %v1894 = vand.u32 %v1344, 4294901760
  %1895 = vmatpush1.msra.mxu0 %v1894
  %1896 = vmatprep.subr.mxu0 0.0
  %v1897 = vand.u32 %v1345, 4294901760
  %1898 = vmatpush1.msra.mxu0 %v1897
  %1899 = vmatprep.subr.mxu0 0.0
  %v1900 = vand.u32 %v1346, 4294901760
  %1901 = vmatpush1.msra.mxu0 %v1900
  %1902 = vmatprep.subr.mxu0 0.0
  %v1903 = vand.u32 %v1347, 4294901760
  %1904 = vmatpush1.msra.mxu0 %v1903
  %1905 = vmatprep.subr.mxu0 0.0
  %v1906 = vand.u32 %v1348, 4294901760
  %1907 = vmatpush1.msra.mxu0 %v1906
  %1908 = vmatprep.subr.mxu0 0.0
  %v1909 = vand.u32 %v1349, 4294901760
  %1910 = vmatpush1.msra.mxu0 %v1909
  %1911 = vmatprep.subr.mxu0 0.0
  %v1912 = vand.u32 %v1350, 4294901760
  %1913 = vmatpush1.msra.mxu0 %v1912
  %1914 = vmatprep.subr.mxu0 0.0
  %v1915 = vand.u32 %v1351, 4294901760
  %1916 = vmatpush1.msra.mxu0 %v1915
  %1917 = vmatprep.subr.mxu0 0.0
  %v1918 = vand.u32 %v1352, 4294901760
  %1919 = vmatpush1.msra.mxu0 %v1918
  %1920 = vmatprep.subr.mxu0 0.0
  %v1921 = vand.u32 %v1353, 4294901760
  %1922 = vmatpush1.msra.mxu0 %v1921
  %1923 = vmatprep.subr.mxu0 0.0
  %v1924 = vand.u32 %v1354, 4294901760
  %1925 = vmatpush1.msra.mxu0 %v1924
  %1926 = vmatprep.subr.mxu0 0.0
  %v1927 = vand.u32 %v1355, 4294901760
  %1928 = vmatpush1.msra.mxu0 %v1927
  %1929 = vmatprep.subr.mxu0 0.0
  %v1930 = vand.u32 %v1356, 4294901760
  %1931 = vmatpush1.msra.mxu0 %v1930
  %1932 = vmatprep.subr.mxu0 0.0
  %v1933 = vand.u32 %v1357, 4294901760
  %1934 = vmatpush1.msra.mxu0 %v1933
  %1935 = vmatprep.subr.mxu0 0.0
  %v1936 = vand.u32 %v1358, 4294901760
  %1937 = vmatpush1.msra.mxu0 %v1936
  %1938 = vmatprep.subr.mxu0 0.0
  %v1939 = vand.u32 %v1359, 4294901760
  %1940 = vmatpush1.msra.mxu0 %v1939
  %1941 = vmatprep.subr.mxu0 0.0
  %v1942 = vand.u32 %v1360, 4294901760
  %1943 = vmatpush1.msra.mxu0 %v1942
  %1944 = vmatprep.subr.mxu0 0.0
  %v1945 = vand.u32 %v1361, 4294901760
  %1946 = vmatpush1.msra.mxu0 %v1945
  %v1947 = vand.u32 %v1327, 4294901760
  %v1948 = vsub.f32 %v1327, %v1947
  %v1949 = vand.u32 %v1948, 4294901760
  %1950 = vmatprep.mubr.f32.mxu0 %v1949
  %v1951 = vand.u32 %v680, 4294901760
  %v1952 = vsub.f32 %v680, %v1951
  %v1953 = vand.u32 %v1952, 4294901760
  %1954 = vmatmul.mubr.f32.gmra.mrb[0].mxu0 %v1953
  %v1955 = vpop.f32.mrb[0].mxu0
  %v1956 = vadd.f32 %v1848, %v1955
  %v1957 = vpop.f32.mrb[0].mxu0
  %1958 = vdwg.mxu0
  %1959 = vmatprep.subr.mxu0 0.0
  %v1960 = vand.u32 %v1330, 4294901760
  %v1961 = vsub.f32 %v1330, %v1960
  %v1962 = vand.u32 %v1961, 4294901760
  %1963 = vmatpush1.msra.mxu0 %v1962
  %1964 = vmatprep.subr.mxu0 0.0
  %v1965 = vand.u32 %v1331, 4294901760
  %v1966 = vsub.f32 %v1331, %v1965
  %v1967 = vand.u32 %v1966, 4294901760
  %1968 = vmatpush1.msra.mxu0 %v1967
  %1969 = vmatprep.subr.mxu0 0.0
  %v1970 = vand.u32 %v1332, 4294901760
  %v1971 = vsub.f32 %v1332, %v1970
  %v1972 = vand.u32 %v1971, 4294901760
  %1973 = vmatpush1.msra.mxu0 %v1972
  %1974 = vmatprep.subr.mxu0 0.0
  %v1975 = vand.u32 %v1333, 4294901760
  %v1976 = vsub.f32 %v1333, %v1975
  %v1977 = vand.u32 %v1976, 4294901760
  %1978 = vmatpush1.msra.mxu0 %v1977
  %1979 = vmatprep.subr.mxu0 0.0
  %v1980 = vand.u32 %v1334, 4294901760
  %v1981 = vsub.f32 %v1334, %v1980
  %v1982 = vand.u32 %v1981, 4294901760
  %1983 = vmatpush1.msra.mxu0 %v1982
  %1984 = vmatprep.subr.mxu0 0.0
  %v1985 = vand.u32 %v1335, 4294901760
  %v1986 = vsub.f32 %v1335, %v1985
  %v1987 = vand.u32 %v1986, 4294901760
  %1988 = vmatpush1.msra.mxu0 %v1987
  %1989 = vmatprep.subr.mxu0 0.0
  %v1990 = vand.u32 %v1336, 4294901760
  %v1991 = vsub.f32 %v1336, %v1990
  %v1992 = vand.u32 %v1991, 4294901760
  %1993 = vmatpush1.msra.mxu0 %v1992
  %1994 = vmatprep.subr.mxu0 0.0
  %v1995 = vand.u32 %v1337, 4294901760
  %v1996 = vsub.f32 %v1337, %v1995
  %v1997 = vand.u32 %v1996, 4294901760
  %1998 = vmatpush1.msra.mxu0 %v1997
  %1999 = vmatprep.subr.mxu0 0.0
  %v2000 = vand.u32 %v1338, 4294901760
  %v2001 = vsub.f32 %v1338, %v2000
  %v2002 = vand.u32 %v2001, 4294901760
  %2003 = vmatpush1.msra.mxu0 %v2002
  %2004 = vmatprep.subr.mxu0 0.0
  %v2005 = vand.u32 %v1339, 4294901760
  %v2006 = vsub.f32 %v1339, %v2005
  %v2007 = vand.u32 %v2006, 4294901760
  %2008 = vmatpush1.msra.mxu0 %v2007
  %2009 = vmatprep.subr.mxu0 0.0
  %v2010 = vand.u32 %v1340, 4294901760
  %v2011 = vsub.f32 %v1340, %v2010
  %v2012 = vand.u32 %v2011, 4294901760
  %2013 = vmatpush1.msra.mxu0 %v2012
  %2014 = vmatprep.subr.mxu0 0.0
  %v2015 = vand.u32 %v1341, 4294901760
  %v2016 = vsub.f32 %v1341, %v2015
  %v2017 = vand.u32 %v2016, 4294901760
  %2018 = vmatpush1.msra.mxu0 %v2017
  %2019 = vmatprep.subr.mxu0 0.0
  %v2020 = vand.u32 %v1342, 4294901760
  %v2021 = vsub.f32 %v1342, %v2020
  %v2022 = vand.u32 %v2021, 4294901760
  %2023 = vmatpush1.msra.mxu0 %v2022
  %2024 = vmatprep.subr.mxu0 0.0
  %v2025 = vand.u32 %v1343, 4294901760
  %v2026 = vsub.f32 %v1343, %v2025
  %v2027 = vand.u32 %v2026, 4294901760
  %2028 = vmatpush1.msra.mxu0 %v2027
  %2029 = vmatprep.subr.mxu0 0.0
  %v2030 = vand.u32 %v1344, 4294901760
  %v2031 = vsub.f32 %v1344, %v2030
  %v2032 = vand.u32 %v2031, 4294901760
  %2033 = vmatpush1.msra.mxu0 %v2032
  %2034 = vmatprep.subr.mxu0 0.0
  %v2035 = vand.u32 %v1345, 4294901760
  %v2036 = vsub.f32 %v1345, %v2035
  %v2037 = vand.u32 %v2036, 4294901760
  %2038 = vmatpush1.msra.mxu0 %v2037
  %2039 = vmatprep.subr.mxu0 0.0
  %v2040 = vand.u32 %v1346, 4294901760
  %v2041 = vsub.f32 %v1346, %v2040
  %v2042 = vand.u32 %v2041, 4294901760
  %2043 = vmatpush1.msra.mxu0 %v2042
  %2044 = vmatprep.subr.mxu0 0.0
  %v2045 = vand.u32 %v1347, 4294901760
  %v2046 = vsub.f32 %v1347, %v2045
  %v2047 = vand.u32 %v2046, 4294901760
  %2048 = vmatpush1.msra.mxu0 %v2047
  %2049 = vmatprep.subr.mxu0 0.0
  %v2050 = vand.u32 %v1348, 4294901760
  %v2051 = vsub.f32 %v1348, %v2050
  %v2052 = vand.u32 %v2051, 4294901760
  %2053 = vmatpush1.msra.mxu0 %v2052
  %2054 = vmatprep.subr.mxu0 0.0
  %v2055 = vand.u32 %v1349, 4294901760
  %v2056 = vsub.f32 %v1349, %v2055
  %v2057 = vand.u32 %v2056, 4294901760
  %2058 = vmatpush1.msra.mxu0 %v2057
  %2059 = vmatprep.subr.mxu0 0.0
  %v2060 = vand.u32 %v1350, 4294901760
  %v2061 = vsub.f32 %v1350, %v2060
  %v2062 = vand.u32 %v2061, 4294901760
  %2063 = vmatpush1.msra.mxu0 %v2062
  %2064 = vmatprep.subr.mxu0 0.0
  %v2065 = vand.u32 %v1351, 4294901760
  %v2066 = vsub.f32 %v1351, %v2065
  %v2067 = vand.u32 %v2066, 4294901760
  %2068 = vmatpush1.msra.mxu0 %v2067
  %2069 = vmatprep.subr.mxu0 0.0
  %v2070 = vand.u32 %v1352, 4294901760
  %v2071 = vsub.f32 %v1352, %v2070
  %v2072 = vand.u32 %v2071, 4294901760
  %2073 = vmatpush1.msra.mxu0 %v2072
  %2074 = vmatprep.subr.mxu0 0.0
  %v2075 = vand.u32 %v1353, 4294901760
  %v2076 = vsub.f32 %v1353, %v2075
  %v2077 = vand.u32 %v2076, 4294901760
  %2078 = vmatpush1.msra.mxu0 %v2077
  %2079 = vmatprep.subr.mxu0 0.0
  %v2080 = vand.u32 %v1354, 4294901760
  %v2081 = vsub.f32 %v1354, %v2080
  %v2082 = vand.u32 %v2081, 4294901760
  %2083 = vmatpush1.msra.mxu0 %v2082
  %2084 = vmatprep.subr.mxu0 0.0
  %v2085 = vand.u32 %v1355, 4294901760
  %v2086 = vsub.f32 %v1355, %v2085
  %v2087 = vand.u32 %v2086, 4294901760
  %2088 = vmatpush1.msra.mxu0 %v2087
  %2089 = vmatprep.subr.mxu0 0.0
  %v2090 = vand.u32 %v1356, 4294901760
  %v2091 = vsub.f32 %v1356, %v2090
  %v2092 = vand.u32 %v2091, 4294901760
  %2093 = vmatpush1.msra.mxu0 %v2092
  %2094 = vmatprep.subr.mxu0 0.0
  %v2095 = vand.u32 %v1357, 4294901760
  %v2096 = vsub.f32 %v1357, %v2095
  %v2097 = vand.u32 %v2096, 4294901760
  %2098 = vmatpush1.msra.mxu0 %v2097
  %2099 = vmatprep.subr.mxu0 0.0
  %v2100 = vand.u32 %v1358, 4294901760
  %v2101 = vsub.f32 %v1358, %v2100
  %v2102 = vand.u32 %v2101, 4294901760
  %2103 = vmatpush1.msra.mxu0 %v2102
  %2104 = vmatprep.subr.mxu0 0.0
  %v2105 = vand.u32 %v1359, 4294901760
  %v2106 = vsub.f32 %v1359, %v2105
  %v2107 = vand.u32 %v2106, 4294901760
  %2108 = vmatpush1.msra.mxu0 %v2107
  %2109 = vmatprep.subr.mxu0 0.0
  %v2110 = vand.u32 %v1360, 4294901760
  %v2111 = vsub.f32 %v1360, %v2110
  %v2112 = vand.u32 %v2111, 4294901760
  %2113 = vmatpush1.msra.mxu0 %v2112
  %2114 = vmatprep.subr.mxu0 0.0
  %v2115 = vand.u32 %v1361, 4294901760
  %v2116 = vsub.f32 %v1361, %v2115
  %v2117 = vand.u32 %v2116, 4294901760
  %2118 = vmatpush1.msra.mxu0 %v2117
  %v2119 = vand.u32 %v1327, 4294901760
  %2120 = vmatprep.mubr.f32.mxu0 %v2119
  %v2121 = vand.u32 %v680, 4294901760
  %2122 = vmatmul.mubr.f32.gmra.mrb[0].mxu0 %v2121
  %v2123 = vpop.f32.mrb[0].mxu0
  %v2124 = vadd.f32 %v1956, %v2123
  %v2125 = vpop.f32.mrb[0].mxu0
  %2126 = vdwg.mxu0
  %2127 = vmatprep.subr.mxu0 0.0
  %v2128 = vand.u32 %v1330, 4294901760
  %2129 = vmatpush1.msra.mxu0 %v2128
  %2130 = vmatprep.subr.mxu0 0.0
  %v2131 = vand.u32 %v1331, 4294901760
  %2132 = vmatpush1.msra.mxu0 %v2131
  %2133 = vmatprep.subr.mxu0 0.0
  %v2134 = vand.u32 %v1332, 4294901760
  %2135 = vmatpush1.msra.mxu0 %v2134
  %2136 = vmatprep.subr.mxu0 0.0
  %v2137 = vand.u32 %v1333, 4294901760
  %2138 = vmatpush1.msra.mxu0 %v2137
  %2139 = vmatprep.subr.mxu0 0.0
  %v2140 = vand.u32 %v1334, 4294901760
  %2141 = vmatpush1.msra.mxu0 %v2140
  %2142 = vmatprep.subr.mxu0 0.0
  %v2143 = vand.u32 %v1335, 4294901760
  %2144 = vmatpush1.msra.mxu0 %v2143
  %2145 = vmatprep.subr.mxu0 0.0
  %v2146 = vand.u32 %v1336, 4294901760
  %2147 = vmatpush1.msra.mxu0 %v2146
  %2148 = vmatprep.subr.mxu0 0.0
  %v2149 = vand.u32 %v1337, 4294901760
  %2150 = vmatpush1.msra.mxu0 %v2149
  %2151 = vmatprep.subr.mxu0 0.0
  %v2152 = vand.u32 %v1338, 4294901760
  %2153 = vmatpush1.msra.mxu0 %v2152
  %2154 = vmatprep.subr.mxu0 0.0
  %v2155 = vand.u32 %v1339, 4294901760
  %2156 = vmatpush1.msra.mxu0 %v2155
  %2157 = vmatprep.subr.mxu0 0.0
  %v2158 = vand.u32 %v1340, 4294901760
  %2159 = vmatpush1.msra.mxu0 %v2158
  %2160 = vmatprep.subr.mxu0 0.0
  %v2161 = vand.u32 %v1341, 4294901760
  %2162 = vmatpush1.msra.mxu0 %v2161
  %2163 = vmatprep.subr.mxu0 0.0
  %v2164 = vand.u32 %v1342, 4294901760
  %2165 = vmatpush1.msra.mxu0 %v2164
  %2166 = vmatprep.subr.mxu0 0.0
  %v2167 = vand.u32 %v1343, 4294901760
  %2168 = vmatpush1.msra.mxu0 %v2167
  %2169 = vmatprep.subr.mxu0 0.0
  %v2170 = vand.u32 %v1344, 4294901760
  %2171 = vmatpush1.msra.mxu0 %v2170
  %2172 = vmatprep.subr.mxu0 0.0
  %v2173 = vand.u32 %v1345, 4294901760
  %2174 = vmatpush1.msra.mxu0 %v2173
  %2175 = vmatprep.subr.mxu0 0.0
  %v2176 = vand.u32 %v1346, 4294901760
  %2177 = vmatpush1.msra.mxu0 %v2176
  %2178 = vmatprep.subr.mxu0 0.0
  %v2179 = vand.u32 %v1347, 4294901760
  %2180 = vmatpush1.msra.mxu0 %v2179
  %2181 = vmatprep.subr.mxu0 0.0
  %v2182 = vand.u32 %v1348, 4294901760
  %2183 = vmatpush1.msra.mxu0 %v2182
  %2184 = vmatprep.subr.mxu0 0.0
  %v2185 = vand.u32 %v1349, 4294901760
  %2186 = vmatpush1.msra.mxu0 %v2185
  %2187 = vmatprep.subr.mxu0 0.0
  %v2188 = vand.u32 %v1350, 4294901760
  %2189 = vmatpush1.msra.mxu0 %v2188
  %2190 = vmatprep.subr.mxu0 0.0
  %v2191 = vand.u32 %v1351, 4294901760
  %2192 = vmatpush1.msra.mxu0 %v2191
  %2193 = vmatprep.subr.mxu0 0.0
  %v2194 = vand.u32 %v1352, 4294901760
  %2195 = vmatpush1.msra.mxu0 %v2194
  %2196 = vmatprep.subr.mxu0 0.0
  %v2197 = vand.u32 %v1353, 4294901760
  %2198 = vmatpush1.msra.mxu0 %v2197
  %2199 = vmatprep.subr.mxu0 0.0
  %v2200 = vand.u32 %v1354, 4294901760
  %2201 = vmatpush1.msra.mxu0 %v2200
  %2202 = vmatprep.subr.mxu0 0.0
  %v2203 = vand.u32 %v1355, 4294901760
  %2204 = vmatpush1.msra.mxu0 %v2203
  %2205 = vmatprep.subr.mxu0 0.0
  %v2206 = vand.u32 %v1356, 4294901760
  %2207 = vmatpush1.msra.mxu0 %v2206
  %2208 = vmatprep.subr.mxu0 0.0
  %v2209 = vand.u32 %v1357, 4294901760
  %2210 = vmatpush1.msra.mxu0 %v2209
  %2211 = vmatprep.subr.mxu0 0.0
  %v2212 = vand.u32 %v1358, 4294901760
  %2213 = vmatpush1.msra.mxu0 %v2212
  %2214 = vmatprep.subr.mxu0 0.0
  %v2215 = vand.u32 %v1359, 4294901760
  %2216 = vmatpush1.msra.mxu0 %v2215
  %2217 = vmatprep.subr.mxu0 0.0
  %v2218 = vand.u32 %v1360, 4294901760
  %2219 = vmatpush1.msra.mxu0 %v2218
  %2220 = vmatprep.subr.mxu0 0.0
  %v2221 = vand.u32 %v1361, 4294901760
  %2222 = vmatpush1.msra.mxu0 %v2221
  %v2223 = vand.u32 %v1327, 4294901760
  %2224 = vmatprep.mubr.f32.mxu0 %v2223
  %v2225 = vand.u32 %v680, 4294901760
  %2226 = vmatmul.mubr.f32.gmra.mrb[0].mxu0 %v2225
  %v2227 = vpop.f32.mrb[0].mxu0
  %v2228 = vadd.f32 %v2124, %v2227
  %v2229 = vpop.f32.mrb[0].mxu0
  %2230 = vdwg.mxu0
  %2231 = vst [vmem:[%s4] sm:$0xff] %v2228
  // Predicated region
  $region18: #{simple_nlp_forward.1} parent=0 // pred_check
    _
  $region19: #{simple_nlp_forward.1} parent=0 // pred_check_branch
    %2233 = sbr.rel (0) target = $region21
  $region20: #{simple_nlp_forward.1} parent=0 // pred_region
    _
  $region21: #{simple_nlp_forward.1} parent=0 // pred_fallthru
    _
  // Predicated region
  $region22: #{simple_nlp_forward.1} parent=0 // pred_check
    _
  $region23: #{simple_nlp_forward.1} parent=0 // pred_check_branch
    %2235 = sbr.rel (0) target = $region25
  $region24: #{simple_nlp_forward.1} parent=0 // pred_region
    _
  $region25: #{simple_nlp_forward.1} parent=0 // pred_fallthru
    _

</llo_original>
